<compile_context>
chip_gen: v7x
topology: tpu7x:2x2x1
jax: 0.10.0
libtpu: 0.0.40
codegen_flags: <defaults>
</compile_context>

<pallas_src>
import jax
import jax.numpy as jnp
from jax.experimental import pallas as pl
from jax.experimental.pallas import tpu as pltpu


TIME_CHUNK = 8  # timesteps per grid step of the recurrent kernel


def _round_up(x, m):
    return ((x + m - 1) // m) * m


# ---------------------------------------------------------------------------
# Generic lane-dense tiled matmul (+ optional bias) kernels
# ---------------------------------------------------------------------------

def _matmul_bias_kernel(a_ref, w_ref, b_ref, o_ref):
    o_ref[...] = (jnp.dot(a_ref[...], w_ref[...],
                          preferred_element_type=jnp.float32)
                  + b_ref[...]).astype(o_ref.dtype)


def _matmul_kernel(a_ref, w_ref, o_ref):
    o_ref[...] = jnp.dot(a_ref[...], w_ref[...],
                         preferred_element_type=jnp.float32
                         ).astype(o_ref.dtype)


def _tiled_matmul(a, w, bias=None, *, tm_target=256, tn_target=256):
    """a: (M, K), w: (K, N), bias: (N,) or None  ->  (M, N) float32.

    Pads M to a sublane multiple and N to a lane multiple (128) so output
    stores are lane-dense, then slices the padding back off.
    """
    M, K = a.shape
    _, N = w.shape

    if M >= tm_target:
        tm = tm_target
        Mp = _round_up(M, tm)
    else:
        Mp = _round_up(M, 8)
        tm = Mp

    Np = _round_up(N, 128)
    if Np >= tn_target and Np % tn_target == 0:
        tn = tn_target
    else:
        tn = 128

    a_p = a if Mp == M else jnp.pad(a, ((0, Mp - M), (0, 0)))
    w_p = w if Np == N else jnp.pad(w, ((0, 0), (0, Np - N)))

    in_specs = [
        pl.BlockSpec((tm, K), lambda i, j: (i, 0)),
        pl.BlockSpec((K, tn), lambda i, j: (0, j)),
    ]
    args = [a_p, w_p]
    if bias is not None:
        b_p = bias.reshape(1, N).astype(jnp.float32)
        if Np != N:
            b_p = jnp.pad(b_p, ((0, 0), (0, Np - N)))
        in_specs.append(pl.BlockSpec((1, tn), lambda i, j: (0, j)))
        args.append(b_p)
        kern = _matmul_bias_kernel
    else:
        kern = _matmul_kernel

    out = pl.pallas_call(
        kern,
        out_shape=jax.ShapeDtypeStruct((Mp, Np), jnp.float32),
        grid_spec=pltpu.PrefetchScalarGridSpec(
            num_scalar_prefetch=0,
            grid=(Mp // tm, Np // tn),
            in_specs=in_specs,
            out_specs=pl.BlockSpec((tm, tn), lambda i, j: (i, j)),
        ),
        compiler_params=pltpu.CompilerParams(
            dimension_semantics=("parallel", "parallel")),
    )(*args)

    return out[:M, :N]


# ---------------------------------------------------------------------------
# Sequential LSTM recurrence (only h @ W_hh per step; gates_x precomputed)
# ---------------------------------------------------------------------------

def _lstm_recurrence_kernel(gx_ref, whh_ref, h_out_ref, h_scr, c_scr):
    """One chunk of TIME_CHUNK timesteps.

    gx_ref:   (Tc, B, 4H)  precomputed x@W_ih + b for the chunk
    whh_ref:  (H, 4H)      hidden->gates weights (pre-transposed)
    h_out_ref:(Tc, B, H)   hidden states for the chunk
    h_scr/c_scr: (B, H)    LSTM state, persists across grid steps
    """
    Tc = gx_ref.shape[0]
    H = h_scr.shape[-1]

    @pl.when(pl.program_id(0) == 0)
    def _():
        h_scr[...] = jnp.zeros_like(h_scr)
        c_scr[...] = jnp.zeros_like(c_scr)

    whh = whh_ref[...]  # hoisted load, reused across the unrolled steps

    def step(t, carry):
        h, c = carry
        gates = gx_ref[t] + jnp.dot(h, whh,
                                    preferred_element_type=jnp.float32)
        # PyTorch LSTM gate order: input, forget, cell(g), output
        i_g = jax.nn.sigmoid(gates[:, 0 * H:1 * H])
        f_g = jax.nn.sigmoid(gates[:, 1 * H:2 * H])
        g_g = jnp.tanh(gates[:, 2 * H:3 * H])
        o_g = jax.nn.sigmoid(gates[:, 3 * H:4 * H])
        c_new = f_g * c + i_g * g_g
        h_new = o_g * jnp.tanh(c_new)
        h_out_ref[t] = h_new
        return (h_new, c_new)

    h_fin, c_fin = jax.lax.fori_loop(0, Tc, step,
                                     (h_scr[...], c_scr[...]),
                                     unroll=True)
    h_scr[...] = h_fin
    c_scr[...] = c_fin


def _lstm_recurrence(gx_tm, W_hh_T):
    """gx_tm: (T, B, 4H) float32 -> h_tm: (T, B, H) float32."""
    T, B, G = gx_tm.shape
    H = W_hh_T.shape[0]

    Tc = min(TIME_CHUNK, T)
    Tp = _round_up(T, Tc)
    if Tp != T:
        # Padded steps run with gates_x = 0; their outputs are discarded.
        gx_tm = jnp.pad(gx_tm, ((0, Tp - T), (0, 0), (0, 0)))

    h_tm = pl.pallas_call(
        _lstm_recurrence_kernel,
        out_shape=jax.ShapeDtypeStruct((Tp, B, H), jnp.float32),
        grid_spec=pltpu.PrefetchScalarGridSpec(
            num_scalar_prefetch=0,
            grid=(Tp // Tc,),
            in_specs=[
                pl.BlockSpec((Tc, B, G), lambda i: (i, 0, 0)),
                pl.BlockSpec((H, G), lambda i: (0, 0)),
            ],
            out_specs=pl.BlockSpec((Tc, B, H), lambda i: (i, 0, 0)),
            scratch_shapes=[
                pltpu.VMEM((B, H), jnp.float32),   # h
                pltpu.VMEM((B, H), jnp.float32),   # c
            ],
        ),
        compiler_params=pltpu.CompilerParams(
            dimension_semantics=("arbitrary",)),   # time carries state
    )(gx_tm, W_hh_T)

    return h_tm[:T]


# ---------------------------------------------------------------------------
# Forward pass
# ---------------------------------------------------------------------------

def rnnlm_forward(tokens, params):
    """tokens: int32 [B, T]  ->  logits float32 [B, T, V]."""
    W_emb = params["W_emb"]            # (V, E)
    W_ih_T = params["W_ih_T"]          # (E, 4H)
    W_hh_T = params["W_hh_T"]          # (H, 4H)
    b = params["b"]                    # (4H,)
    W_out_T = params["W_out_T"]        # (H, V)

    B, T = tokens.shape
    V, E = W_emb.shape
    H = W_hh_T.shape[0]

    # Embedding lookup + (identity) dropout -- glue in plain JAX.
    x_embed = W_emb[tokens]                          # (B, T, E)
    x_tm = jnp.transpose(x_embed, (1, 0, 2))         # (T, B, E) time-major

    # (1) Hoisted input-to-hidden gates: one big matmul, bias folded in.
    #     bf16 operands on the MXU, f32 accumulation.
    gx_flat = _tiled_matmul(
        x_tm.reshape(T * B, E).astype(jnp.bfloat16),
        W_ih_T.astype(jnp.bfloat16),
        bias=b)                                      # (T*B, 4H) f32
    gx_tm = gx_flat.reshape(T, B, 4 * H)

    # (2) Sequential LSTM recurrence (h/c/gate math stays in f32).
    h_tm = _lstm_recurrence(gx_tm, W_hh_T)           # (T, B, H) f32

    # (3) Deferred, lane-dense output projection, batch-first output.
    h_bf = jnp.transpose(h_tm, (1, 0, 2)).reshape(B * T, H)
    logits_flat = _tiled_matmul(
        h_bf.astype(jnp.bfloat16),
        W_out_T.astype(jnp.bfloat16))                # (B*T, V) f32
    return logits_flat.reshape(B, T, V)


def rnnlm_forward_ref(tokens, params):
    """Pure-JAX reference (mirrors PyTorch nn.LSTM + F.linear semantics)."""
    W_emb = params["W_emb"]
    W_ih_T, W_hh_T, b, W_out_T = (params["W_ih_T"], params["W_hh_T"],
                                  params["b"], params["W_out_T"])
    B, T = tokens.shape
    H = W_hh_T.shape[0]
    x_embed = W_emb[tokens]                          # (B, T, E)

    def step(carry, x_t):
        h, c = carry
        gates = x_t @ W_ih_T + h @ W_hh_T + b
        i_g = jax.nn.sigmoid(gates[:, 0 * H:1 * H])
        f_g = jax.nn.sigmoid(gates[:, 1 * H:2 * H])
        g_g = jnp.tanh(gates[:, 2 * H:3 * H])
        o_g = jax.nn.sigmoid(gates[:, 3 * H:4 * H])
        c_new = f_g * c + i_g * g_g
        h_new = o_g * jnp.tanh(c_new)
        return (h_new, c_new), h_new @ W_out_T

    init = (jnp.zeros((B, H), jnp.float32), jnp.zeros((B, H), jnp.float32))
    _, logits_tm = jax.lax.scan(step, init, jnp.transpose(x_embed, (1, 0, 2)))
    return jnp.transpose(logits_tm, (1, 0, 2))


def init_params(key, vocab_size, emb_size, hidden_size, pad_idx):
    """Deterministic synthetic parameters (same shapes as the PyTorch module)."""
    ks = jax.random.split(key, 6)
    W_emb = 0.1 * jax.random.normal(ks[0], (vocab_size, emb_size), jnp.float32)
    W_emb = W_emb.at[pad_idx].set(0.0)               # padding_idx row is zero
    s = 1.0 / jnp.sqrt(jnp.float32(hidden_size))
    W_ih = jax.random.uniform(ks[1], (4 * hidden_size, emb_size),
                              jnp.float32, -s, s)
    W_hh = jax.random.uniform(ks[2], (4 * hidden_size, hidden_size),
                              jnp.float32, -s, s)
    b_ih = jax.random.uniform(ks[3], (4 * hidden_size,), jnp.float32, -s, s)
    b_hh = jax.random.uniform(ks[4], (4 * hidden_size,), jnp.float32, -s, s)
    # tied_embeddings=False -> separate output matrix (vocab_size, hidden_size)
    W_out = 0.1 * jax.random.normal(ks[5], (vocab_size, hidden_size),
                                    jnp.float32)
    return {
        "W_emb": W_emb,
        "W_ih_T": jnp.asarray(W_ih.T),
        "W_hh_T": jnp.asarray(W_hh.T),
        "b": b_ih + b_hh,
        "W_out_T": jnp.asarray(W_out.T),
    }


if __name__ == "__main__":
    # Small RNNLM config: vocab=48, emb=32, hidden=32, pad_idx=0,
    # num_layers=1, cell_type='lstm', tied_embeddings=False, feed_z_size=0.
    VOCAB, EMB, HID, PAD = 48, 32, 32, 0
    B, T = 2, 8

    key = jax.random.PRNGKey(0)
    k_par, k_tok = jax.random.split(key)
    params = init_params(k_par, VOCAB, EMB, HID, PAD)
    tokens = jax.random.randint(k_tok, (B, T), 0, VOCAB, dtype=jnp.int32)

    logits = jax.jit(rnnlm_forward)(tokens, params)
    jax.block_until_ready(logits)

    assert logits.shape == (B, T, VOCAB), logits.shape
    ref = rnnlm_forward_ref(tokens, params)
    assert jnp.allclose(logits, ref, atol=2e-2, rtol=2e-2), (
        float(jnp.max(jnp.abs(logits - ref))))

    print("KERNEL_OK")
</pallas_src>

<mosaic_0001>
module attributes {stable_mosaic.version = 11 : i64} {
  func.func @_matmul_bias_kernel(%arg0: i32, %arg1: i32, %arg2: memref<16x32xbf16, #tpu.memory_space<vmem>>, %arg3: memref<32x128xbf16, #tpu.memory_space<vmem>>, %arg4: memref<1x128xf32, #tpu.memory_space<vmem>>, %arg5: memref<16x128xf32, #tpu.memory_space<vmem>>) attributes {dimension_semantics = [#tpu.dimension_semantics<parallel>, #tpu.dimension_semantics<parallel>], iteration_bounds = array<i64: 1, 1>, scalar_prefetch = 0 : i64, scratch_operands = 0 : i64, tpu.core_type = #tpu.core_type<tc>, window_params = [{transform_indices = @transform_0, window_bounds = array<i64: 16, 32>}, {transform_indices = @transform_1, window_bounds = array<i64: 32, 128>}, {transform_indices = @transform_2, window_bounds = array<i64: 1, 128>}, {transform_indices = @transform_3, window_bounds = array<i64: 16, 128>}]} {
    %c0 = arith.constant 0 : index
    %c0_0 = arith.constant 0 : index
    %0 = vector.load %arg2[%c0, %c0_0] : memref<16x32xbf16, #tpu.memory_space<vmem>>, vector<16x32xbf16>
    %c0_1 = arith.constant 0 : index
    %c0_2 = arith.constant 0 : index
    %1 = vector.load %arg3[%c0_1, %c0_2] : memref<32x128xbf16, #tpu.memory_space<vmem>>, vector<32x128xbf16>
    %cst = arith.constant dense<0.000000e+00> : vector<16x128xf32>
    %2 = tpu.matmul %0, %1, %cst {dimension_numbers = #tpu.dot_dimension_numbers<[1], [0], [0], [1], [0, 0, 1, 1], [], []>} : vector<16x32xbf16>, vector<32x128xbf16>, vector<16x128xf32> -> vector<16x128xf32>
    %c0_3 = arith.constant 0 : index
    %c0_4 = arith.constant 0 : index
    %3 = vector.load %arg4[%c0_3, %c0_4] : memref<1x128xf32, #tpu.memory_space<vmem>>, vector<1x128xf32>
    %4 = vector.broadcast %3 : vector<1x128xf32> to vector<16x128xf32>
    %5 = arith.addf %2, %4 : vector<16x128xf32>
    %c0_5 = arith.constant 0 : index
    %c0_6 = arith.constant 0 : index
    %6 = vector.load %arg5[%c0_5, %c0_6] : memref<16x128xf32, #tpu.memory_space<vmem>>, vector<16x128xf32>
    tpu.vector_store %arg5[%c0_5, %c0_6], %5 {strides = array<i32>} : memref<16x128xf32, #tpu.memory_space<vmem>>, vector<16x128xf32>,
    return
  }
  func.func @transform_0(%arg0: i32, %arg1: i32) -> (i32, i32) {
    %c0_i32 = arith.constant 0 : i32
    %c0_i32_0 = arith.constant 0 : i32
    return %arg0, %c0_i32 : i32, i32
  }
  func.func @transform_1(%arg0: i32, %arg1: i32) -> (i32, i32) {
    %c0_i32 = arith.constant 0 : i32
    %c0_i32_0 = arith.constant 0 : i32
    return %c0_i32, %arg1 : i32, i32
  }
  func.func @transform_2(%arg0: i32, %arg1: i32) -> (i32, i32) {
    %c0_i32 = arith.constant 0 : i32
    %c0_i32_0 = arith.constant 0 : i32
    return %c0_i32, %arg1 : i32, i32
  }
  func.func @transform_3(%arg0: i32, %arg1: i32) -> (i32, i32) {
    %c0_i32 = arith.constant 0 : i32
    return %arg0, %arg1 : i32, i32
  }
}

module attributes {stable_mosaic.version = 11 : i64} {
  func.func @_lstm_recurrence_kernel(%arg0: i32, %arg1: memref<8x2x128xf32, #tpu.memory_space<vmem>>, %arg2: memref<32x128xf32, #tpu.memory_space<vmem>>, %arg3: memref<8x2x32xf32, #tpu.memory_space<vmem>>, %arg4: memref<2x32xf32, #tpu.memory_space<vmem>>, %arg5: memref<2x32xf32, #tpu.memory_space<vmem>>) attributes {dimension_semantics = [#tpu.dimension_semantics<arbitrary>], iteration_bounds = array<i64: 1>, scalar_prefetch = 0 : i64, scratch_operands = 2 : i64, tpu.core_type = #tpu.core_type<tc>, window_params = [{transform_indices = @transform_0, window_bounds = array<i64: 8, 2, 128>}, {pipeline_mode = #tpu.pipeline_mode<synchronous>, transform_indices = @transform_1, window_bounds = array<i64: 32, 128>}, {transform_indices = @transform_2, window_bounds = array<i64: 8, 2, 32>}]} {
    %c0_i32 = arith.constant 0 : i32
    %0 = arith.cmpi eq, %arg0, %c0_i32 : i32
    %1 = arith.extui %0 : i1 to i32
    %c0_i32_0 = arith.constant 0 : i32
    %2 = arith.cmpi ne, %1, %c0_i32_0 : i32
    scf.if %2 {
      %cst_74 = arith.constant 0.000000e+00 : f32
      %280 = vector.broadcast %cst_74 : f32 to vector<2x32xf32>
      %c0_75 = arith.constant 0 : index
      %c0_76 = arith.constant 0 : index
      %281 = vector.load %arg4[%c0_75, %c0_76] : memref<2x32xf32, #tpu.memory_space<vmem>>, vector<2x32xf32>
      tpu.vector_store %arg4[%c0_75, %c0_76], %280 {strides = array<i32>} : memref<2x32xf32, #tpu.memory_space<vmem>>, vector<2x32xf32>,
      %cst_77 = arith.constant 0.000000e+00 : f32
      %282 = vector.broadcast %cst_77 : f32 to vector<2x32xf32>
      %c0_78 = arith.constant 0 : index
      %c0_79 = arith.constant 0 : index
      %283 = vector.load %arg5[%c0_78, %c0_79] : memref<2x32xf32, #tpu.memory_space<vmem>>, vector<2x32xf32>
      tpu.vector_store %arg5[%c0_78, %c0_79], %282 {strides = array<i32>} : memref<2x32xf32, #tpu.memory_space<vmem>>, vector<2x32xf32>,
    } else {
    }
    %c0 = arith.constant 0 : index
    %c0_1 = arith.constant 0 : index
    %3 = vector.load %arg2[%c0, %c0_1] : memref<32x128xf32, #tpu.memory_space<vmem>>, vector<32x128xf32>
    %c0_2 = arith.constant 0 : index
    %c0_3 = arith.constant 0 : index
    %4 = vector.load %arg4[%c0_2, %c0_3] : memref<2x32xf32, #tpu.memory_space<vmem>>, vector<2x32xf32>
    %c0_4 = arith.constant 0 : index
    %c0_5 = arith.constant 0 : index
    %5 = vector.load %arg5[%c0_4, %c0_5] : memref<2x32xf32, #tpu.memory_space<vmem>>, vector<2x32xf32>
    %c0_i32_6 = arith.constant 0 : i32
    %6 = arith.index_cast %c0_i32_6 : i32 to index
    %c0_7 = arith.constant 0 : index
    %c0_8 = arith.constant 0 : index
    %7 = vector.load %arg1[%6, %c0_7, %c0_8] : memref<8x2x128xf32, #tpu.memory_space<vmem>>, vector<1x2x128xf32>
    %8 = vector.shape_cast %7 : vector<1x2x128xf32> to vector<2x128xf32>
    %cst = arith.constant dense<0.000000e+00> : vector<2x128xf32>
    %9 = tpu.matmul %4, %3, %cst {dimension_numbers = #tpu.dot_dimension_numbers<[1], [0], [0], [1], [0, 0, 1, 1], [], []>} : vector<2x32xf32>, vector<32x128xf32>, vector<2x128xf32> -> vector<2x128xf32>
    %10 = arith.addf %8, %9 : vector<2x128xf32>
    %11 = vector.extract_strided_slice %10 {offsets = [0, 0], sizes = [2, 32], strides = [1, 1]} : vector<2x128xf32> to vector<2x32xf32>
    %12 = arith.negf %11 : vector<2x32xf32>
    %13 = math.exp %12 : vector<2x32xf32>
    %cst_9 = arith.constant 1.000000e+00 : f32
    %14 = vector.broadcast %cst_9 : f32 to vector<2x32xf32>
    %15 = arith.addf %14, %13 : vector<2x32xf32>
    %16 = arith.divf %14, %15 : vector<2x32xf32>
    %17 = vector.extract_strided_slice %10 {offsets = [0, 32], sizes = [2, 32], strides = [1, 1]} : vector<2x128xf32> to vector<2x32xf32>
    %18 = arith.negf %17 : vector<2x32xf32>
    %19 = math.exp %18 : vector<2x32xf32>
    %cst_10 = arith.constant 1.000000e+00 : f32
    %20 = vector.broadcast %cst_10 : f32 to vector<2x32xf32>
    %21 = arith.addf %20, %19 : vector<2x32xf32>
    %22 = arith.divf %20, %21 : vector<2x32xf32>
    %23 = vector.extract_strided_slice %10 {offsets = [0, 64], sizes = [2, 32], strides = [1, 1]} : vector<2x128xf32> to vector<2x32xf32>
    %24 = math.tanh %23 : vector<2x32xf32>
    %25 = vector.extract_strided_slice %10 {offsets = [0, 96], sizes = [2, 32], strides = [1, 1]} : vector<2x128xf32> to vector<2x32xf32>
    %26 = arith.negf %25 : vector<2x32xf32>
    %27 = math.exp %26 : vector<2x32xf32>
    %cst_11 = arith.constant 1.000000e+00 : f32
    %28 = vector.broadcast %cst_11 : f32 to vector<2x32xf32>
    %29 = arith.addf %28, %27 : vector<2x32xf32>
    %30 = arith.divf %28, %29 : vector<2x32xf32>
    %31 = arith.mulf %22, %5 : vector<2x32xf32>
    %32 = arith.mulf %16, %24 : vector<2x32xf32>
    %33 = arith.addf %31, %32 : vector<2x32xf32>
    %34 = math.tanh %33 : vector<2x32xf32>
    %35 = arith.mulf %30, %34 : vector<2x32xf32>
    %36 = arith.index_cast %c0_i32_6 : i32 to index
    %c0_12 = arith.constant 0 : index
    %c0_13 = arith.constant 0 : index
    %37 = vector.load %arg3[%36, %c0_12, %c0_13] : memref<8x2x32xf32, #tpu.memory_space<vmem>>, vector<1x2x32xf32>
    %38 = vector.shape_cast %37 : vector<1x2x32xf32> to vector<2x32xf32>
    %39 = vector.shape_cast %35 : vector<2x32xf32> to vector<1x2x32xf32>
    tpu.vector_store %arg3[%36, %c0_12, %c0_13], %39 {strides = array<i32>} : memref<8x2x32xf32, #tpu.memory_space<vmem>>, vector<1x2x32xf32>,
    %c1_i32 = arith.constant 1 : i32
    %40 = arith.index_cast %c1_i32 : i32 to index
    %c0_14 = arith.constant 0 : index
    %c0_15 = arith.constant 0 : index
    %41 = vector.load %arg1[%40, %c0_14, %c0_15] : memref<8x2x128xf32, #tpu.memory_space<vmem>>, vector<1x2x128xf32>
    %42 = vector.shape_cast %41 : vector<1x2x128xf32> to vector<2x128xf32>
    %cst_16 = arith.constant dense<0.000000e+00> : vector<2x128xf32>
    %43 = tpu.matmul %35, %3, %cst_16 {dimension_numbers = #tpu.dot_dimension_numbers<[1], [0], [0], [1], [0, 0, 1, 1], [], []>} : vector<2x32xf32>, vector<32x128xf32>, vector<2x128xf32> -> vector<2x128xf32>
    %44 = arith.addf %42, %43 : vector<2x128xf32>
    %45 = vector.extract_strided_slice %44 {offsets = [0, 0], sizes = [2, 32], strides = [1, 1]} : vector<2x128xf32> to vector<2x32xf32>
    %46 = arith.negf %45 : vector<2x32xf32>
    %47 = math.exp %46 : vector<2x32xf32>
    %cst_17 = arith.constant 1.000000e+00 : f32
    %48 = vector.broadcast %cst_17 : f32 to vector<2x32xf32>
    %49 = arith.addf %48, %47 : vector<2x32xf32>
    %50 = arith.divf %48, %49 : vector<2x32xf32>
    %51 = vector.extract_strided_slice %44 {offsets = [0, 32], sizes = [2, 32], strides = [1, 1]} : vector<2x128xf32> to vector<2x32xf32>
    %52 = arith.negf %51 : vector<2x32xf32>
    %53 = math.exp %52 : vector<2x32xf32>
    %cst_18 = arith.constant 1.000000e+00 : f32
    %54 = vector.broadcast %cst_18 : f32 to vector<2x32xf32>
    %55 = arith.addf %54, %53 : vector<2x32xf32>
    %56 = arith.divf %54, %55 : vector<2x32xf32>
    %57 = vector.extract_strided_slice %44 {offsets = [0, 64], sizes = [2, 32], strides = [1, 1]} : vector<2x128xf32> to vector<2x32xf32>
    %58 = math.tanh %57 : vector<2x32xf32>
    %59 = vector.extract_strided_slice %44 {offsets = [0, 96], sizes = [2, 32], strides = [1, 1]} : vector<2x128xf32> to vector<2x32xf32>
    %60 = arith.negf %59 : vector<2x32xf32>
    %61 = math.exp %60 : vector<2x32xf32>
    %cst_19 = arith.constant 1.000000e+00 : f32
    %62 = vector.broadcast %cst_19 : f32 to vector<2x32xf32>
    %63 = arith.addf %62, %61 : vector<2x32xf32>
    %64 = arith.divf %62, %63 : vector<2x32xf32>
    %65 = arith.mulf %56, %33 : vector<2x32xf32>
    %66 = arith.mulf %50, %58 : vector<2x32xf32>
    %67 = arith.addf %65, %66 : vector<2x32xf32>
    %68 = math.tanh %67 : vector<2x32xf32>
    %69 = arith.mulf %64, %68 : vector<2x32xf32>
    %70 = arith.index_cast %c1_i32 : i32 to index
    %c0_20 = arith.constant 0 : index
    %c0_21 = arith.constant 0 : index
    %71 = vector.load %arg3[%70, %c0_20, %c0_21] : memref<8x2x32xf32, #tpu.memory_space<vmem>>, vector<1x2x32xf32>
    %72 = vector.shape_cast %71 : vector<1x2x32xf32> to vector<2x32xf32>
    %73 = vector.shape_cast %69 : vector<2x32xf32> to vector<1x2x32xf32>
    tpu.vector_store %arg3[%70, %c0_20, %c0_21], %73 {strides = array<i32>} : memref<8x2x32xf32, #tpu.memory_space<vmem>>, vector<1x2x32xf32>,
    %c2_i32 = arith.constant 2 : i32
    %74 = arith.index_cast %c2_i32 : i32 to index
    %c0_22 = arith.constant 0 : index
    %c0_23 = arith.constant 0 : index
    %75 = vector.load %arg1[%74, %c0_22, %c0_23] : memref<8x2x128xf32, #tpu.memory_space<vmem>>, vector<1x2x128xf32>
    %76 = vector.shape_cast %75 : vector<1x2x128xf32> to vector<2x128xf32>
    %cst_24 = arith.constant dense<0.000000e+00> : vector<2x128xf32>
    %77 = tpu.matmul %69, %3, %cst_24 {dimension_numbers = #tpu.dot_dimension_numbers<[1], [0], [0], [1], [0, 0, 1, 1], [], []>} : vector<2x32xf32>, vector<32x128xf32>, vector<2x128xf32> -> vector<2x128xf32>
    %78 = arith.addf %76, %77 : vector<2x128xf32>
    %79 = vector.extract_strided_slice %78 {offsets = [0, 0], sizes = [2, 32], strides = [1, 1]} : vector<2x128xf32> to vector<2x32xf32>
    %80 = arith.negf %79 : vector<2x32xf32>
    %81 = math.exp %80 : vector<2x32xf32>
    %cst_25 = arith.constant 1.000000e+00 : f32
    %82 = vector.broadcast %cst_25 : f32 to vector<2x32xf32>
    %83 = arith.addf %82, %81 : vector<2x32xf32>
    %84 = arith.divf %82, %83 : vector<2x32xf32>
    %85 = vector.extract_strided_slice %78 {offsets = [0, 32], sizes = [2, 32], strides = [1, 1]} : vector<2x128xf32> to vector<2x32xf32>
    %86 = arith.negf %85 : vector<2x32xf32>
    %87 = math.exp %86 : vector<2x32xf32>
    %cst_26 = arith.constant 1.000000e+00 : f32
    %88 = vector.broadcast %cst_26 : f32 to vector<2x32xf32>
    %89 = arith.addf %88, %87 : vector<2x32xf32>
    %90 = arith.divf %88, %89 : vector<2x32xf32>
    %91 = vector.extract_strided_slice %78 {offsets = [0, 64], sizes = [2, 32], strides = [1, 1]} : vector<2x128xf32> to vector<2x32xf32>
    %92 = math.tanh %91 : vector<2x32xf32>
    %93 = vector.extract_strided_slice %78 {offsets = [0, 96], sizes = [2, 32], strides = [1, 1]} : vector<2x128xf32> to vector<2x32xf32>
    %94 = arith.negf %93 : vector<2x32xf32>
    %95 = math.exp %94 : vector<2x32xf32>
    %cst_27 = arith.constant 1.000000e+00 : f32
    %96 = vector.broadcast %cst_27 : f32 to vector<2x32xf32>
    %97 = arith.addf %96, %95 : vector<2x32xf32>
    %98 = arith.divf %96, %97 : vector<2x32xf32>
    %99 = arith.mulf %90, %67 : vector<2x32xf32>
    %100 = arith.mulf %84, %92 : vector<2x32xf32>
    %101 = arith.addf %99, %100 : vector<2x32xf32>
    %102 = math.tanh %101 : vector<2x32xf32>
    %103 = arith.mulf %98, %102 : vector<2x32xf32>
    %104 = arith.index_cast %c2_i32 : i32 to index
    %c0_28 = arith.constant 0 : index
    %c0_29 = arith.constant 0 : index
    %105 = vector.load %arg3[%104, %c0_28, %c0_29] : memref<8x2x32xf32, #tpu.memory_space<vmem>>, vector<1x2x32xf32>
    %106 = vector.shape_cast %105 : vector<1x2x32xf32> to vector<2x32xf32>
    %107 = vector.shape_cast %103 : vector<2x32xf32> to vector<1x2x32xf32>
    tpu.vector_store %arg3[%104, %c0_28, %c0_29], %107 {strides = array<i32>} : memref<8x2x32xf32, #tpu.memory_space<vmem>>, vector<1x2x32xf32>,
    %c3_i32 = arith.constant 3 : i32
    %108 = arith.index_cast %c3_i32 : i32 to index
    %c0_30 = arith.constant 0 : index
    %c0_31 = arith.constant 0 : index
    %109 = vector.load %arg1[%108, %c0_30, %c0_31] : memref<8x2x128xf32, #tpu.memory_space<vmem>>, vector<1x2x128xf32>
    %110 = vector.shape_cast %109 : vector<1x2x128xf32> to vector<2x128xf32>
    %cst_32 = arith.constant dense<0.000000e+00> : vector<2x128xf32>
    %111 = tpu.matmul %103, %3, %cst_32 {dimension_numbers = #tpu.dot_dimension_numbers<[1], [0], [0], [1], [0, 0, 1, 1], [], []>} : vector<2x32xf32>, vector<32x128xf32>, vector<2x128xf32> -> vector<2x128xf32>
    %112 = arith.addf %110, %111 : vector<2x128xf32>
    %113 = vector.extract_strided_slice %112 {offsets = [0, 0], sizes = [2, 32], strides = [1, 1]} : vector<2x128xf32> to vector<2x32xf32>
    %114 = arith.negf %113 : vector<2x32xf32>
    %115 = math.exp %114 : vector<2x32xf32>
    %cst_33 = arith.constant 1.000000e+00 : f32
    %116 = vector.broadcast %cst_33 : f32 to vector<2x32xf32>
    %117 = arith.addf %116, %115 : vector<2x32xf32>
    %118 = arith.divf %116, %117 : vector<2x32xf32>
    %119 = vector.extract_strided_slice %112 {offsets = [0, 32], sizes = [2, 32], strides = [1, 1]} : vector<2x128xf32> to vector<2x32xf32>
    %120 = arith.negf %119 : vector<2x32xf32>
    %121 = math.exp %120 : vector<2x32xf32>
    %cst_34 = arith.constant 1.000000e+00 : f32
    %122 = vector.broadcast %cst_34 : f32 to vector<2x32xf32>
    %123 = arith.addf %122, %121 : vector<2x32xf32>
    %124 = arith.divf %122, %123 : vector<2x32xf32>
    %125 = vector.extract_strided_slice %112 {offsets = [0, 64], sizes = [2, 32], strides = [1, 1]} : vector<2x128xf32> to vector<2x32xf32>
    %126 = math.tanh %125 : vector<2x32xf32>
    %127 = vector.extract_strided_slice %112 {offsets = [0, 96], sizes = [2, 32], strides = [1, 1]} : vector<2x128xf32> to vector<2x32xf32>
    %128 = arith.negf %127 : vector<2x32xf32>
    %129 = math.exp %128 : vector<2x32xf32>
    %cst_35 = arith.constant 1.000000e+00 : f32
    %130 = vector.broadcast %cst_35 : f32 to vector<2x32xf32>
    %131 = arith.addf %130, %129 : vector<2x32xf32>
    %132 = arith.divf %130, %131 : vector<2x32xf32>
    %133 = arith.mulf %124, %101 : vector<2x32xf32>
    %134 = arith.mulf %118, %126 : vector<2x32xf32>
    %135 = arith.addf %133, %134 : vector<2x32xf32>
    %136 = math.tanh %135 : vector<2x32xf32>
    %137 = arith.mulf %132, %136 : vector<2x32xf32>
    %138 = arith.index_cast %c3_i32 : i32 to index
    %c0_36 = arith.constant 0 : index
    %c0_37 = arith.constant 0 : index
    %139 = vector.load %arg3[%138, %c0_36, %c0_37] : memref<8x2x32xf32, #tpu.memory_space<vmem>>, vector<1x2x32xf32>
    %140 = vector.shape_cast %139 : vector<1x2x32xf32> to vector<2x32xf32>
    %141 = vector.shape_cast %137 : vector<2x32xf32> to vector<1x2x32xf32>
    tpu.vector_store %arg3[%138, %c0_36, %c0_37], %141 {strides = array<i32>} : memref<8x2x32xf32, #tpu.memory_space<vmem>>, vector<1x2x32xf32>,
    %c4_i32 = arith.constant 4 : i32
    %142 = arith.index_cast %c4_i32 : i32 to index
    %c0_38 = arith.constant 0 : index
    %c0_39 = arith.constant 0 : index
    %143 = vector.load %arg1[%142, %c0_38, %c0_39] : memref<8x2x128xf32, #tpu.memory_space<vmem>>, vector<1x2x128xf32>
    %144 = vector.shape_cast %143 : vector<1x2x128xf32> to vector<2x128xf32>
    %cst_40 = arith.constant dense<0.000000e+00> : vector<2x128xf32>
    %145 = tpu.matmul %137, %3, %cst_40 {dimension_numbers = #tpu.dot_dimension_numbers<[1], [0], [0], [1], [0, 0, 1, 1], [], []>} : vector<2x32xf32>, vector<32x128xf32>, vector<2x128xf32> -> vector<2x128xf32>
    %146 = arith.addf %144, %145 : vector<2x128xf32>
    %147 = vector.extract_strided_slice %146 {offsets = [0, 0], sizes = [2, 32], strides = [1, 1]} : vector<2x128xf32> to vector<2x32xf32>
    %148 = arith.negf %147 : vector<2x32xf32>
    %149 = math.exp %148 : vector<2x32xf32>
    %cst_41 = arith.constant 1.000000e+00 : f32
    %150 = vector.broadcast %cst_41 : f32 to vector<2x32xf32>
    %151 = arith.addf %150, %149 : vector<2x32xf32>
    %152 = arith.divf %150, %151 : vector<2x32xf32>
    %153 = vector.extract_strided_slice %146 {offsets = [0, 32], sizes = [2, 32], strides = [1, 1]} : vector<2x128xf32> to vector<2x32xf32>
    %154 = arith.negf %153 : vector<2x32xf32>
    %155 = math.exp %154 : vector<2x32xf32>
    %cst_42 = arith.constant 1.000000e+00 : f32
    %156 = vector.broadcast %cst_42 : f32 to vector<2x32xf32>
    %157 = arith.addf %156, %155 : vector<2x32xf32>
    %158 = arith.divf %156, %157 : vector<2x32xf32>
    %159 = vector.extract_strided_slice %146 {offsets = [0, 64], sizes = [2, 32], strides = [1, 1]} : vector<2x128xf32> to vector<2x32xf32>
    %160 = math.tanh %159 : vector<2x32xf32>
    %161 = vector.extract_strided_slice %146 {offsets = [0, 96], sizes = [2, 32], strides = [1, 1]} : vector<2x128xf32> to vector<2x32xf32>
    %162 = arith.negf %161 : vector<2x32xf32>
    %163 = math.exp %162 : vector<2x32xf32>
    %cst_43 = arith.constant 1.000000e+00 : f32
    %164 = vector.broadcast %cst_43 : f32 to vector<2x32xf32>
    %165 = arith.addf %164, %163 : vector<2x32xf32>
    %166 = arith.divf %164, %165 : vector<2x32xf32>
    %167 = arith.mulf %158, %135 : vector<2x32xf32>
    %168 = arith.mulf %152, %160 : vector<2x32xf32>
    %169 = arith.addf %167, %168 : vector<2x32xf32>
    %170 = math.tanh %169 : vector<2x32xf32>
    %171 = arith.mulf %166, %170 : vector<2x32xf32>
    %172 = arith.index_cast %c4_i32 : i32 to index
    %c0_44 = arith.constant 0 : index
    %c0_45 = arith.constant 0 : index
    %173 = vector.load %arg3[%172, %c0_44, %c0_45] : memref<8x2x32xf32, #tpu.memory_space<vmem>>, vector<1x2x32xf32>
    %174 = vector.shape_cast %173 : vector<1x2x32xf32> to vector<2x32xf32>
    %175 = vector.shape_cast %171 : vector<2x32xf32> to vector<1x2x32xf32>
    tpu.vector_store %arg3[%172, %c0_44, %c0_45], %175 {strides = array<i32>} : memref<8x2x32xf32, #tpu.memory_space<vmem>>, vector<1x2x32xf32>,
    %c5_i32 = arith.constant 5 : i32
    %176 = arith.index_cast %c5_i32 : i32 to index
    %c0_46 = arith.constant 0 : index
    %c0_47 = arith.constant 0 : index
    %177 = vector.load %arg1[%176, %c0_46, %c0_47] : memref<8x2x128xf32, #tpu.memory_space<vmem>>, vector<1x2x128xf32>
    %178 = vector.shape_cast %177 : vector<1x2x128xf32> to vector<2x128xf32>
    %cst_48 = arith.constant dense<0.000000e+00> : vector<2x128xf32>
    %179 = tpu.matmul %171, %3, %cst_48 {dimension_numbers = #tpu.dot_dimension_numbers<[1], [0], [0], [1], [0, 0, 1, 1], [], []>} : vector<2x32xf32>, vector<32x128xf32>, vector<2x128xf32> -> vector<2x128xf32>
    %180 = arith.addf %178, %179 : vector<2x128xf32>
    %181 = vector.extract_strided_slice %180 {offsets = [0, 0], sizes = [2, 32], strides = [1, 1]} : vector<2x128xf32> to vector<2x32xf32>
    %182 = arith.negf %181 : vector<2x32xf32>
    %183 = math.exp %182 : vector<2x32xf32>
    %cst_49 = arith.constant 1.000000e+00 : f32
    %184 = vector.broadcast %cst_49 : f32 to vector<2x32xf32>
    %185 = arith.addf %184, %183 : vector<2x32xf32>
    %186 = arith.divf %184, %185 : vector<2x32xf32>
    %187 = vector.extract_strided_slice %180 {offsets = [0, 32], sizes = [2, 32], strides = [1, 1]} : vector<2x128xf32> to vector<2x32xf32>
    %188 = arith.negf %187 : vector<2x32xf32>
    %189 = math.exp %188 : vector<2x32xf32>
    %cst_50 = arith.constant 1.000000e+00 : f32
    %190 = vector.broadcast %cst_50 : f32 to vector<2x32xf32>
    %191 = arith.addf %190, %189 : vector<2x32xf32>
    %192 = arith.divf %190, %191 : vector<2x32xf32>
    %193 = vector.extract_strided_slice %180 {offsets = [0, 64], sizes = [2, 32], strides = [1, 1]} : vector<2x128xf32> to vector<2x32xf32>
    %194 = math.tanh %193 : vector<2x32xf32>
    %195 = vector.extract_strided_slice %180 {offsets = [0, 96], sizes = [2, 32], strides = [1, 1]} : vector<2x128xf32> to vector<2x32xf32>
    %196 = arith.negf %195 : vector<2x32xf32>
    %197 = math.exp %196 : vector<2x32xf32>
    %cst_51 = arith.constant 1.000000e+00 : f32
    %198 = vector.broadcast %cst_51 : f32 to vector<2x32xf32>
    %199 = arith.addf %198, %197 : vector<2x32xf32>
    %200 = arith.divf %198, %199 : vector<2x32xf32>
    %201 = arith.mulf %192, %169 : vector<2x32xf32>
    %202 = arith.mulf %186, %194 : vector<2x32xf32>
    %203 = arith.addf %201, %202 : vector<2x32xf32>
    %204 = math.tanh %203 : vector<2x32xf32>
    %205 = arith.mulf %200, %204 : vector<2x32xf32>
    %206 = arith.index_cast %c5_i32 : i32 to index
    %c0_52 = arith.constant 0 : index
    %c0_53 = arith.constant 0 : index
    %207 = vector.load %arg3[%206, %c0_52, %c0_53] : memref<8x2x32xf32, #tpu.memory_space<vmem>>, vector<1x2x32xf32>
    %208 = vector.shape_cast %207 : vector<1x2x32xf32> to vector<2x32xf32>
    %209 = vector.shape_cast %205 : vector<2x32xf32> to vector<1x2x32xf32>
    tpu.vector_store %arg3[%206, %c0_52, %c0_53], %209 {strides = array<i32>} : memref<8x2x32xf32, #tpu.memory_space<vmem>>, vector<1x2x32xf32>,
    %c6_i32 = arith.constant 6 : i32
    %210 = arith.index_cast %c6_i32 : i32 to index
    %c0_54 = arith.constant 0 : index
    %c0_55 = arith.constant 0 : index
    %211 = vector.load %arg1[%210, %c0_54, %c0_55] : memref<8x2x128xf32, #tpu.memory_space<vmem>>, vector<1x2x128xf32>
    %212 = vector.shape_cast %211 : vector<1x2x128xf32> to vector<2x128xf32>
    %cst_56 = arith.constant dense<0.000000e+00> : vector<2x128xf32>
    %213 = tpu.matmul %205, %3, %cst_56 {dimension_numbers = #tpu.dot_dimension_numbers<[1], [0], [0], [1], [0, 0, 1, 1], [], []>} : vector<2x32xf32>, vector<32x128xf32>, vector<2x128xf32> -> vector<2x128xf32>
    %214 = arith.addf %212, %213 : vector<2x128xf32>
    %215 = vector.extract_strided_slice %214 {offsets = [0, 0], sizes = [2, 32], strides = [1, 1]} : vector<2x128xf32> to vector<2x32xf32>
    %216 = arith.negf %215 : vector<2x32xf32>
    %217 = math.exp %216 : vector<2x32xf32>
    %cst_57 = arith.constant 1.000000e+00 : f32
    %218 = vector.broadcast %cst_57 : f32 to vector<2x32xf32>
    %219 = arith.addf %218, %217 : vector<2x32xf32>
    %220 = arith.divf %218, %219 : vector<2x32xf32>
    %221 = vector.extract_strided_slice %214 {offsets = [0, 32], sizes = [2, 32], strides = [1, 1]} : vector<2x128xf32> to vector<2x32xf32>
    %222 = arith.negf %221 : vector<2x32xf32>
    %223 = math.exp %222 : vector<2x32xf32>
    %cst_58 = arith.constant 1.000000e+00 : f32
    %224 = vector.broadcast %cst_58 : f32 to vector<2x32xf32>
    %225 = arith.addf %224, %223 : vector<2x32xf32>
    %226 = arith.divf %224, %225 : vector<2x32xf32>
    %227 = vector.extract_strided_slice %214 {offsets = [0, 64], sizes = [2, 32], strides = [1, 1]} : vector<2x128xf32> to vector<2x32xf32>
    %228 = math.tanh %227 : vector<2x32xf32>
    %229 = vector.extract_strided_slice %214 {offsets = [0, 96], sizes = [2, 32], strides = [1, 1]} : vector<2x128xf32> to vector<2x32xf32>
    %230 = arith.negf %229 : vector<2x32xf32>
    %231 = math.exp %230 : vector<2x32xf32>
    %cst_59 = arith.constant 1.000000e+00 : f32
    %232 = vector.broadcast %cst_59 : f32 to vector<2x32xf32>
    %233 = arith.addf %232, %231 : vector<2x32xf32>
    %234 = arith.divf %232, %233 : vector<2x32xf32>
    %235 = arith.mulf %226, %203 : vector<2x32xf32>
    %236 = arith.mulf %220, %228 : vector<2x32xf32>
    %237 = arith.addf %235, %236 : vector<2x32xf32>
    %238 = math.tanh %237 : vector<2x32xf32>
    %239 = arith.mulf %234, %238 : vector<2x32xf32>
    %240 = arith.index_cast %c6_i32 : i32 to index
    %c0_60 = arith.constant 0 : index
    %c0_61 = arith.constant 0 : index
    %241 = vector.load %arg3[%240, %c0_60, %c0_61] : memref<8x2x32xf32, #tpu.memory_space<vmem>>, vector<1x2x32xf32>
    %242 = vector.shape_cast %241 : vector<1x2x32xf32> to vector<2x32xf32>
    %243 = vector.shape_cast %239 : vector<2x32xf32> to vector<1x2x32xf32>
    tpu.vector_store %arg3[%240, %c0_60, %c0_61], %243 {strides = array<i32>} : memref<8x2x32xf32, #tpu.memory_space<vmem>>, vector<1x2x32xf32>,
    %c7_i32 = arith.constant 7 : i32
    %244 = arith.index_cast %c7_i32 : i32 to index
    %c0_62 = arith.constant 0 : index
    %c0_63 = arith.constant 0 : index
    %245 = vector.load %arg1[%244, %c0_62, %c0_63] : memref<8x2x128xf32, #tpu.memory_space<vmem>>, vector<1x2x128xf32>
    %246 = vector.shape_cast %245 : vector<1x2x128xf32> to vector<2x128xf32>
    %cst_64 = arith.constant dense<0.000000e+00> : vector<2x128xf32>
    %247 = tpu.matmul %239, %3, %cst_64 {dimension_numbers = #tpu.dot_dimension_numbers<[1], [0], [0], [1], [0, 0, 1, 1], [], []>} : vector<2x32xf32>, vector<32x128xf32>, vector<2x128xf32> -> vector<2x128xf32>
    %248 = arith.addf %246, %247 : vector<2x128xf32>
    %249 = vector.extract_strided_slice %248 {offsets = [0, 0], sizes = [2, 32], strides = [1, 1]} : vector<2x128xf32> to vector<2x32xf32>
    %250 = arith.negf %249 : vector<2x32xf32>
    %251 = math.exp %250 : vector<2x32xf32>
    %cst_65 = arith.constant 1.000000e+00 : f32
    %252 = vector.broadcast %cst_65 : f32 to vector<2x32xf32>
    %253 = arith.addf %252, %251 : vector<2x32xf32>
    %254 = arith.divf %252, %253 : vector<2x32xf32>
    %255 = vector.extract_strided_slice %248 {offsets = [0, 32], sizes = [2, 32], strides = [1, 1]} : vector<2x128xf32> to vector<2x32xf32>
    %256 = arith.negf %255 : vector<2x32xf32>
    %257 = math.exp %256 : vector<2x32xf32>
    %cst_66 = arith.constant 1.000000e+00 : f32
    %258 = vector.broadcast %cst_66 : f32 to vector<2x32xf32>
    %259 = arith.addf %258, %257 : vector<2x32xf32>
    %260 = arith.divf %258, %259 : vector<2x32xf32>
    %261 = vector.extract_strided_slice %248 {offsets = [0, 64], sizes = [2, 32], strides = [1, 1]} : vector<2x128xf32> to vector<2x32xf32>
    %262 = math.tanh %261 : vector<2x32xf32>
    %263 = vector.extract_strided_slice %248 {offsets = [0, 96], sizes = [2, 32], strides = [1, 1]} : vector<2x128xf32> to vector<2x32xf32>
    %264 = arith.negf %263 : vector<2x32xf32>
    %265 = math.exp %264 : vector<2x32xf32>
    %cst_67 = arith.constant 1.000000e+00 : f32
    %266 = vector.broadcast %cst_67 : f32 to vector<2x32xf32>
    %267 = arith.addf %266, %265 : vector<2x32xf32>
    %268 = arith.divf %266, %267 : vector<2x32xf32>
    %269 = arith.mulf %260, %237 : vector<2x32xf32>
    %270 = arith.mulf %254, %262 : vector<2x32xf32>
    %271 = arith.addf %269, %270 : vector<2x32xf32>
    %272 = math.tanh %271 : vector<2x32xf32>
    %273 = arith.mulf %268, %272 : vector<2x32xf32>
    %274 = arith.index_cast %c7_i32 : i32 to index
    %c0_68 = arith.constant 0 : index
    %c0_69 = arith.constant 0 : index
    %275 = vector.load %arg3[%274, %c0_68, %c0_69] : memref<8x2x32xf32, #tpu.memory_space<vmem>>, vector<1x2x32xf32>
    %276 = vector.shape_cast %275 : vector<1x2x32xf32> to vector<2x32xf32>
    %277 = vector.shape_cast %273 : vector<2x32xf32> to vector<1x2x32xf32>
    tpu.vector_store %arg3[%274, %c0_68, %c0_69], %277 {strides = array<i32>} : memref<8x2x32xf32, #tpu.memory_space<vmem>>, vector<1x2x32xf32>,
    %c8_i32 = arith.constant 8 : i32
    %c0_70 = arith.constant 0 : index
    %c0_71 = arith.constant 0 : index
    %278 = vector.load %arg4[%c0_70, %c0_71] : memref<2x32xf32, #tpu.memory_space<vmem>>, vector<2x32xf32>
    tpu.vector_store %arg4[%c0_70, %c0_71], %273 {strides = array<i32>} : memref<2x32xf32, #tpu.memory_space<vmem>>, vector<2x32xf32>,
    %c0_72 = arith.constant 0 : index
    %c0_73 = arith.constant 0 : index
    %279 = vector.load %arg5[%c0_72, %c0_73] : memref<2x32xf32, #tpu.memory_space<vmem>>, vector<2x32xf32>
    tpu.vector_store %arg5[%c0_72, %c0_73], %271 {strides = array<i32>} : memref<2x32xf32, #tpu.memory_space<vmem>>, vector<2x32xf32>,
    return
  }
  func.func @transform_0(%arg0: i32) -> (i32, i32, i32) {
    %c0_i32 = arith.constant 0 : i32
    %c0_i32_0 = arith.constant 0 : i32
    %c0_i32_1 = arith.constant 0 : i32
    return %arg0, %c0_i32, %c0_i32_0 : i32, i32, i32
  }
  func.func @transform_1(%arg0: i32) -> (i32, i32) {
    %c0_i32 = arith.constant 0 : i32
    %c0_i32_0 = arith.constant 0 : i32
    %c0_i32_1 = arith.constant 0 : i32
    return %c0_i32, %c0_i32_0 : i32, i32
  }
  func.func @transform_2(%arg0: i32) -> (i32, i32, i32) {
    %c0_i32 = arith.constant 0 : i32
    %c0_i32_0 = arith.constant 0 : i32
    %c0_i32_1 = arith.constant 0 : i32
    return %arg0, %c0_i32, %c0_i32_0 : i32, i32, i32
  }
}

module attributes {stable_mosaic.version = 11 : i64} {
  func.func @_matmul_kernel(%arg0: i32, %arg1: i32, %arg2: memref<16x32xbf16, #tpu.memory_space<vmem>>, %arg3: memref<32x128xbf16, #tpu.memory_space<vmem>>, %arg4: memref<16x128xf32, #tpu.memory_space<vmem>>) attributes {dimension_semantics = [#tpu.dimension_semantics<parallel>, #tpu.dimension_semantics<parallel>], iteration_bounds = array<i64: 1, 1>, scalar_prefetch = 0 : i64, scratch_operands = 0 : i64, tpu.core_type = #tpu.core_type<tc>, window_params = [{transform_indices = @transform_0, window_bounds = array<i64: 16, 32>}, {transform_indices = @transform_1, window_bounds = array<i64: 32, 128>}, {transform_indices = @transform_2, window_bounds = array<i64: 16, 128>}]} {
    %c0 = arith.constant 0 : index
    %c0_0 = arith.constant 0 : index
    %0 = vector.load %arg2[%c0, %c0_0] : memref<16x32xbf16, #tpu.memory_space<vmem>>, vector<16x32xbf16>
    %c0_1 = arith.constant 0 : index
    %c0_2 = arith.constant 0 : index
    %1 = vector.load %arg3[%c0_1, %c0_2] : memref<32x128xbf16, #tpu.memory_space<vmem>>, vector<32x128xbf16>
    %cst = arith.constant dense<0.000000e+00> : vector<16x128xf32>
    %2 = tpu.matmul %0, %1, %cst {dimension_numbers = #tpu.dot_dimension_numbers<[1], [0], [0], [1], [0, 0, 1, 1], [], []>} : vector<16x32xbf16>, vector<32x128xbf16>, vector<16x128xf32> -> vector<16x128xf32>
    %c0_3 = arith.constant 0 : index
    %c0_4 = arith.constant 0 : index
    %3 = vector.load %arg4[%c0_3, %c0_4] : memref<16x128xf32, #tpu.memory_space<vmem>>, vector<16x128xf32>
    tpu.vector_store %arg4[%c0_3, %c0_4], %2 {strides = array<i32>} : memref<16x128xf32, #tpu.memory_space<vmem>>, vector<16x128xf32>,
    return
  }
  func.func @transform_0(%arg0: i32, %arg1: i32) -> (i32, i32) {
    %c0_i32 = arith.constant 0 : i32
    %c0_i32_0 = arith.constant 0 : i32
    return %arg0, %c0_i32 : i32, i32
  }
  func.func @transform_1(%arg0: i32, %arg1: i32) -> (i32, i32) {
    %c0_i32 = arith.constant 0 : i32
    %c0_i32_0 = arith.constant 0 : i32
    return %c0_i32, %arg1 : i32, i32
  }
  func.func @transform_2(%arg0: i32, %arg1: i32) -> (i32, i32) {
    %c0_i32 = arith.constant 0 : i32
    return %arg0, %arg1 : i32, i32
  }
}

</mosaic_0001>

<llo_original>
// kernel: rnnlm_forward.3
$region0: #{rnnlm_forward.3}
  #allocation0 [shape = 'u32[]', space=smem, size = 0x4, offset = 0x4, fixed_abs, tag = 'smem constant byte address 0x4 - core index']
  #allocation1 [shape = 'u32[144,128]{1,0:T(1,128)}', space=vmem, size = 0x12000, scoped, tag = 'internal scratch']
  %s0 = inlined_call_operand.vmem [shape: bf16[16,32], index: 0, kind: input, shape index: {}]
  %s1 = inlined_call_operand.vmem [shape: bf16[32,128], index: 1, kind: input, shape index: {}]
  %s2 = inlined_call_operand.vmem [shape: f32[1,128], index: 2, kind: input, shape index: {}]
  %s3 = inlined_call_operand.vmem [shape: f32[16,128], index: 3, kind: output, shape index: {}]
  %s4 = sld [smem:[#allocation0]]
  $region22: #{rnnlm_forward.3} parent=0
    _
  %s6 = ssub.s32 1, %s4
  %s7 = scalar_select 0, %s6, %s4
  // Predicated region
  $region2: #{rnnlm_forward.3} parent=0 // pred_check
    _
  $region3: #{rnnlm_forward.3} parent=0 // pred_check_branch
    %9 = sbr.rel (0) target = $region5
  $region4: #{rnnlm_forward.3} parent=0 // pred_region
    _
  $region5: #{rnnlm_forward.3} parent=0 // pred_fallthru
    _
  // Predicated region
  $region6: #{rnnlm_forward.3} parent=0 // pred_check
    _
  $region7: #{rnnlm_forward.3} parent=0 // pred_check_branch
    %11 = sbr.rel (0) target = $region9
  $region8: #{rnnlm_forward.3} parent=0 // pred_region
    _
  $region9: #{rnnlm_forward.3} parent=0 // pred_fallthru
    _
  // Predicated region
  $region10: #{rnnlm_forward.3} parent=0 // pred_check
    _
  $region11: #{rnnlm_forward.3} parent=0 // pred_check_branch
    %13 = sbr.rel (0) target = $region13
  $region12: #{rnnlm_forward.3} parent=0 // pred_region
    _
  $region13: #{rnnlm_forward.3} parent=0 // pred_fallthru
    _
  %v15 = vld [vmem:[%s0] sm:$0xf]
  %v16 = vld [vmem:[%s0 + $0x4] sm:$0xf]
  %v17 = vld [vmem:[%s1] sm:$0xf]
  %v18 = vld [vmem:[%s1 + $0x4] sm:$0xf]
  %v19 = vld [vmem:[%s1 + $0x8] sm:$0xf]
  %v20 = vld [vmem:[%s1 + $0xc] sm:$0xf]
  %v21 = vld [vmem:[%s2] sm:$0x1]
  %v23 = vlaneseq
  %v24 = vshrl.u32 %v23, 7
  %v25 = vsub.s32 0, %v24
  %v26 = vrot.slane %v21, %v25
  %v30 = vunpack.c.l.b16 %v15
  %v31 = vunpack.c.l.b16 %v16
  %v32 = vpack.c.b16 %v31, %v30
  %v37 = vunpack.c.l.b16 %v17
  %v38 = vunpack.c.l.b16 %v18
  %v39 = vunpack.c.l.b16 %v19
  %v40 = vunpack.c.l.b16 %v20
  %v41 = vpack.c.b16 %v38, %v37
  %v42 = vpack.c.b16 %v40, %v39
  %vm45 = vcmask 261120
  %v47 = vsel %vm45, %v32, 0
  %49 = vmatprep.subr.bf16.mxu0 0
  %50 = vmatpush1.bf16.msra.mxu0 %v41
  %51 = vmatprep.subr.bf16.mxu0 0
  %52 = vmatpush1.bf16.msra.mxu0 %v42
  %53 = vmatprep.subr.bf16.mxu0 0
  %54 = vmatpush1.bf16.msra.mxu0 0
  %55 = vmatprep.subr.bf16.mxu0 0
  %56 = vmatpush1.bf16.msra.mxu0 0
  %57 = vmatprep.subr.bf16.mxu0 0
  %58 = vmatpush1.bf16.msra.mxu0 0
  %59 = vmatprep.subr.bf16.mxu0 0
  %60 = vmatpush1.bf16.msra.mxu0 0
  %61 = vmatprep.subr.bf16.mxu0 0
  %62 = vmatpush1.bf16.msra.mxu0 0
  %63 = vmatprep.subr.bf16.mxu0 0
  %64 = vmatpush1.bf16.msra.mxu0 0
  %65 = vmatprep.subr.bf16.mxu0 0
  %66 = vmatpush1.bf16.msra.mxu0 0
  %67 = vmatprep.subr.bf16.mxu0 0
  %68 = vmatpush1.bf16.msra.mxu0 0
  %69 = vmatprep.subr.bf16.mxu0 0
  %70 = vmatpush1.bf16.msra.mxu0 0
  %71 = vmatprep.subr.bf16.mxu0 0
  %72 = vmatpush1.bf16.msra.mxu0 0
  %73 = vmatprep.subr.bf16.mxu0 0
  %74 = vmatpush1.bf16.msra.mxu0 0
  %75 = vmatprep.subr.bf16.mxu0 0
  %76 = vmatpush1.bf16.msra.mxu0 0
  %77 = vmatprep.subr.bf16.mxu0 0
  %78 = vmatpush1.bf16.msra.mxu0 0
  %79 = vmatprep.subr.bf16.mxu0 0
  %80 = vmatpush1.bf16.msra.mxu0 0
  %81 = vmatprep.mubr.bf16.mxu0 0
  %82 = vmatmul.mubr.bf16.gmra.mrb[0].mxu0 %v47
  %v83 = vpop.f32.mrb[0].mxu0
  %v84 = vadd.f32 %v26, %v83
  %v85 = vpop.f32.mrb[0].mxu0
  %v86 = vpop.f32.mrb[0].mxu0
  %v87 = vadd.f32 %v26, %v86
  %v88 = vpop.f32.mrb[0].mxu0
  %89 = vdwg.mxu0
  %90 = vst [vmem:[%s3] sm:$0xff] %v84
  %91 = vst [vmem:[%s3 + $0x8] sm:$0xff] %v87
  // Predicated region
  $region14: #{rnnlm_forward.3} parent=0 // pred_check
    _
  $region15: #{rnnlm_forward.3} parent=0 // pred_check_branch
    %93 = sbr.rel (0) target = $region17
  $region16: #{rnnlm_forward.3} parent=0 // pred_region
    _
  $region17: #{rnnlm_forward.3} parent=0 // pred_fallthru
    _
  // Predicated region
  $region18: #{rnnlm_forward.3} parent=0 // pred_check
    _
  $region19: #{rnnlm_forward.3} parent=0 // pred_check_branch
    %95 = sbr.rel (0) target = $region21
  $region20: #{rnnlm_forward.3} parent=0 // pred_region
    _
  $region21: #{rnnlm_forward.3} parent=0 // pred_fallthru
    _

// kernel: rnnlm_forward.5
$region0: #{rnnlm_forward.5}
  #allocation0 [shape = 'u32[]', space=smem, size = 0x4, offset = 0x4, fixed_abs, tag = 'smem constant byte address 0x4 - core index']
  #allocation1 [shape = 'u32[144,128]{1,0:T(1,128)}', space=vmem, size = 0x12000, scoped, tag = 'internal scratch']
  %s0 = inlined_call_operand.vmem [shape: bf16[16,32], index: 0, kind: input, shape index: {}]
  %s1 = inlined_call_operand.vmem [shape: bf16[32,128], index: 1, kind: input, shape index: {}]
  %s2 = inlined_call_operand.vmem [shape: f32[16,128], index: 2, kind: output, shape index: {}]
  %s3 = sld [smem:[#allocation0]]
  $region18: #{rnnlm_forward.5} parent=0
    _
  %s5 = ssub.s32 1, %s3
  %s6 = scalar_select 0, %s5, %s3
  // Predicated region
  $region2: #{rnnlm_forward.5} parent=0 // pred_check
    _
  $region3: #{rnnlm_forward.5} parent=0 // pred_check_branch
    %8 = sbr.rel (0) target = $region5
  $region4: #{rnnlm_forward.5} parent=0 // pred_region
    _
  $region5: #{rnnlm_forward.5} parent=0 // pred_fallthru
    _
  // Predicated region
  $region6: #{rnnlm_forward.5} parent=0 // pred_check
    _
  $region7: #{rnnlm_forward.5} parent=0 // pred_check_branch
    %10 = sbr.rel (0) target = $region9
  $region8: #{rnnlm_forward.5} parent=0 // pred_region
    _
  $region9: #{rnnlm_forward.5} parent=0 // pred_fallthru
    _
  %v12 = vld [vmem:[%s0] sm:$0xf]
  %v13 = vld [vmem:[%s0 + $0x4] sm:$0xf]
  %v14 = vld [vmem:[%s1] sm:$0xf]
  %v15 = vld [vmem:[%s1 + $0x4] sm:$0xf]
  %v16 = vld [vmem:[%s1 + $0x8] sm:$0xf]
  %v17 = vld [vmem:[%s1 + $0xc] sm:$0xf]
  %v20 = vunpack.c.l.b16 %v12
  %v21 = vunpack.c.l.b16 %v13
  %v22 = vpack.c.b16 %v21, %v20
  %v27 = vunpack.c.l.b16 %v14
  %v28 = vunpack.c.l.b16 %v15
  %v29 = vunpack.c.l.b16 %v16
  %v30 = vunpack.c.l.b16 %v17
  %v31 = vpack.c.b16 %v28, %v27
  %v32 = vpack.c.b16 %v30, %v29
  %vm35 = vcmask 261120
  %v37 = vsel %vm35, %v22, 0
  %39 = vmatprep.subr.bf16.mxu0 0
  %40 = vmatpush1.bf16.msra.mxu0 %v31
  %41 = vmatprep.subr.bf16.mxu0 0
  %42 = vmatpush1.bf16.msra.mxu0 %v32
  %43 = vmatprep.subr.bf16.mxu0 0
  %44 = vmatpush1.bf16.msra.mxu0 0
  %45 = vmatprep.subr.bf16.mxu0 0
  %46 = vmatpush1.bf16.msra.mxu0 0
  %47 = vmatprep.subr.bf16.mxu0 0
  %48 = vmatpush1.bf16.msra.mxu0 0
  %49 = vmatprep.subr.bf16.mxu0 0
  %50 = vmatpush1.bf16.msra.mxu0 0
  %51 = vmatprep.subr.bf16.mxu0 0
  %52 = vmatpush1.bf16.msra.mxu0 0
  %53 = vmatprep.subr.bf16.mxu0 0
  %54 = vmatpush1.bf16.msra.mxu0 0
  %55 = vmatprep.subr.bf16.mxu0 0
  %56 = vmatpush1.bf16.msra.mxu0 0
  %57 = vmatprep.subr.bf16.mxu0 0
  %58 = vmatpush1.bf16.msra.mxu0 0
  %59 = vmatprep.subr.bf16.mxu0 0
  %60 = vmatpush1.bf16.msra.mxu0 0
  %61 = vmatprep.subr.bf16.mxu0 0
  %62 = vmatpush1.bf16.msra.mxu0 0
  %63 = vmatprep.subr.bf16.mxu0 0
  %64 = vmatpush1.bf16.msra.mxu0 0
  %65 = vmatprep.subr.bf16.mxu0 0
  %66 = vmatpush1.bf16.msra.mxu0 0
  %67 = vmatprep.subr.bf16.mxu0 0
  %68 = vmatpush1.bf16.msra.mxu0 0
  %69 = vmatprep.subr.bf16.mxu0 0
  %70 = vmatpush1.bf16.msra.mxu0 0
  %71 = vmatprep.mubr.bf16.mxu0 0
  %72 = vmatmul.mubr.bf16.gmra.mrb[0].mxu0 %v37
  %v73 = vpop.f32.mrb[0].mxu0
  %v74 = vadd.f32 0.0, %v73
  %v75 = vpop.f32.mrb[0].mxu0
  %v76 = vpop.f32.mrb[0].mxu0
  %v77 = vadd.f32 0.0, %v76
  %v78 = vpop.f32.mrb[0].mxu0
  %79 = vdwg.mxu0
  %80 = vst [vmem:[%s2] sm:$0xff] %v74
  %81 = vst [vmem:[%s2 + $0x8] sm:$0xff] %v77
  // Predicated region
  $region10: #{rnnlm_forward.5} parent=0 // pred_check
    _
  $region11: #{rnnlm_forward.5} parent=0 // pred_check_branch
    %83 = sbr.rel (0) target = $region13
  $region12: #{rnnlm_forward.5} parent=0 // pred_region
    _
  $region13: #{rnnlm_forward.5} parent=0 // pred_fallthru
    _
  // Predicated region
  $region14: #{rnnlm_forward.5} parent=0 // pred_check
    _
  $region15: #{rnnlm_forward.5} parent=0 // pred_check_branch
    %85 = sbr.rel (0) target = $region17
  $region16: #{rnnlm_forward.5} parent=0 // pred_region
    _
  $region17: #{rnnlm_forward.5} parent=0 // pred_fallthru
    _

// kernel: rnnlm_forward.4
$region0: #{rnnlm_forward.4}
  #allocation0 [shape = 'u32[]', space=smem, size = 0x4, offset = 0x4, fixed_abs, tag = 'smem constant byte address 0x4 - core index']
  #allocation1 [shape = 'u32[144,128]{1,0:T(1,128)}', space=vmem, size = 0x12000, scoped, tag = 'internal scratch']
  #allocation2 [shape = 'f32[2,32]{1,0:T(2,128)}', space=vmem, size = 0x400, scoped, tag = 'scratch operand']
  #allocation3 [shape = 'f32[2,32]{1,0:T(2,128)}', space=vmem, size = 0x400, scoped, tag = 'scratch operand']
  %s0 = inlined_call_operand.vmem [shape: f32[8,2,128], index: 0, kind: input, shape index: {}]
  %s1 = inlined_call_operand.vmem [shape: f32[32,128], index: 1, kind: input, shape index: {}]
  %s2 = inlined_call_operand.vmem [shape: f32[8,2,32], index: 2, kind: output, shape index: {}]
  %s3 = sld [smem:[#allocation0]]
  $region22: #{rnnlm_forward.4} parent=0
    _
  %s5 = ssub.s32 1, %s3
  %s6 = scalar_select 0, %s5, %s3
  // Predicated region
  $region2: #{rnnlm_forward.4} parent=0 // pred_check
    _
  $region3: #{rnnlm_forward.4} parent=0 // pred_check_branch
    %8 = sbr.rel (0) target = $region5
  $region4: #{rnnlm_forward.4} parent=0 // pred_region
    _
  $region5: #{rnnlm_forward.4} parent=0 // pred_fallthru
    _
  // Predicated region
  $region6: #{rnnlm_forward.4} parent=0 // pred_check
    _
  $region7: #{rnnlm_forward.4} parent=0 // pred_check_branch
    %10 = sbr.rel (0) target = $region9
  $region8: #{rnnlm_forward.4} parent=0 // pred_region
    _
  $region9: #{rnnlm_forward.4} parent=0 // pred_fallthru
    _
  %p11 = scmp.eq.s32.totalorder 0, 0
  // Predicated region
  $region10: #{rnnlm_forward.4} parent=0 // pred_check
    %p12 = pneg %p11
  $region11: #{rnnlm_forward.4} parent=0 // pred_check_branch
    %14 = sbr.rel (%p12) target = $region13
  $region12: #{rnnlm_forward.4} parent=0 // pred_region
    %vm15 = vcmask 254976
    %16 = vst.msk [vmem:[#allocation2] sm:$0x3] %vm15, 0.0
    %17 = vst.msk [vmem:[#allocation3] sm:$0x3] %vm15, 0.0
  $region13: #{rnnlm_forward.4} parent=0 // pred_fallthru
    _
  %v18 = vld [vmem:[%s1] sm:$0xff]
  %v19 = vld [vmem:[%s1 + $0x8] sm:$0xff]
  %v20 = vld [vmem:[%s1 + $0x10] sm:$0xff]
  %v21 = vld [vmem:[%s1 + $0x18] sm:$0xff]
  %v22 = vld [vmem:[#allocation2] sm:$0x3]
  %v23 = vld [vmem:[#allocation3] sm:$0x3]
  %v24 = vld [vmem:[%s0] sm:$0x3]
  %vm25 = vcmask 261120
  %v27 = vsel %vm25, %v22, 0
  %29 = vmatprep.subr.mxu0 0.0
  %30 = vmatpush1.msra.mxu0 %v18
  %31 = vmatprep.subr.mxu0 0.0
  %32 = vmatpush1.msra.mxu0 %v19
  %33 = vmatprep.subr.mxu0 0.0
  %34 = vmatpush1.msra.mxu0 %v20
  %35 = vmatprep.subr.mxu0 0.0
  %36 = vmatpush1.msra.mxu0 %v21
  %37 = vmatprep.subr.mxu0 0.0
  %38 = vmatpush1.msra.mxu0 0.0
  %39 = vmatprep.subr.mxu0 0.0
  %40 = vmatpush1.msra.mxu0 0.0
  %41 = vmatprep.subr.mxu0 0.0
  %42 = vmatpush1.msra.mxu0 0.0
  %43 = vmatprep.subr.mxu0 0.0
  %44 = vmatpush1.msra.mxu0 0.0
  %45 = vmatprep.subr.mxu0 0.0
  %46 = vmatpush1.msra.mxu0 0.0
  %47 = vmatprep.subr.mxu0 0.0
  %48 = vmatpush1.msra.mxu0 0.0
  %49 = vmatprep.subr.mxu0 0.0
  %50 = vmatpush1.msra.mxu0 0.0
  %51 = vmatprep.subr.mxu0 0.0
  %52 = vmatpush1.msra.mxu0 0.0
  %53 = vmatprep.subr.mxu0 0.0
  %54 = vmatpush1.msra.mxu0 0.0
  %55 = vmatprep.subr.mxu0 0.0
  %56 = vmatpush1.msra.mxu0 0.0
  %57 = vmatprep.subr.mxu0 0.0
  %58 = vmatpush1.msra.mxu0 0.0
  %59 = vmatprep.subr.mxu0 0.0
  %60 = vmatpush1.msra.mxu0 0.0
  %61 = vmatprep.subr.mxu0 0.0
  %62 = vmatpush1.msra.mxu0 0.0
  %63 = vmatprep.subr.mxu0 0.0
  %64 = vmatpush1.msra.mxu0 0.0
  %65 = vmatprep.subr.mxu0 0.0
  %66 = vmatpush1.msra.mxu0 0.0
  %67 = vmatprep.subr.mxu0 0.0
  %68 = vmatpush1.msra.mxu0 0.0
  %69 = vmatprep.subr.mxu0 0.0
  %70 = vmatpush1.msra.mxu0 0.0
  %71 = vmatprep.subr.mxu0 0.0
  %72 = vmatpush1.msra.mxu0 0.0
  %73 = vmatprep.subr.mxu0 0.0
  %74 = vmatpush1.msra.mxu0 0.0
  %75 = vmatprep.subr.mxu0 0.0
  %76 = vmatpush1.msra.mxu0 0.0
  %77 = vmatprep.subr.mxu0 0.0
  %78 = vmatpush1.msra.mxu0 0.0
  %79 = vmatprep.subr.mxu0 0.0
  %80 = vmatpush1.msra.mxu0 0.0
  %81 = vmatprep.subr.mxu0 0.0
  %82 = vmatpush1.msra.mxu0 0.0
  %83 = vmatprep.subr.mxu0 0.0
  %84 = vmatpush1.msra.mxu0 0.0
  %85 = vmatprep.subr.mxu0 0.0
  %86 = vmatpush1.msra.mxu0 0.0
  %87 = vmatprep.subr.mxu0 0.0
  %88 = vmatpush1.msra.mxu0 0.0
  %89 = vmatprep.subr.mxu0 0.0
  %90 = vmatpush1.msra.mxu0 0.0
  %91 = vmatprep.subr.mxu0 0.0
  %92 = vmatpush1.msra.mxu0 0.0
  %93 = vmatprep.mubr.f32.mxu0 0.0
  %94 = vmatmul.mubr.f32.gmra.mrb[0].mxu0 %v27
  %v95 = vpop.f32.mrb[0].mxu0
  %v96 = vadd.f32 0.0, %v95
  %v97 = vpop.f32.mrb[0].mxu0
  %98 = vdwg.mxu0
  %v99 = vadd.f32 %v24, %v96
  %v100 = vxor.u32 %v99, 2147483648
  %v101 = vmul.f32 %v100, 1.442695
  %v102 = vpow.pop %v101
  %v103 = vadd.f32 %v102, 1.0
  %v104 = vrcp.pop %v103
  %v105 = vmul.f32 1.0, %v104
  %v106 = vtanh.pop %v99
  %108 = vrot.lane.b32.xlu0 %v23, 32
  %v109 = vpop.permute.xlu0 %108
  %v111 = vmul.f32 %v105, %v109
  %113 = vrot.lane.b32.xlu0 %v106, 64
  %v114 = vpop.permute.xlu0 %113
  %v116 = vmul.f32 %v105, %v114
  %118 = vrot.lane.b32.xlu0 %v116, 32
  %v119 = vpop.permute.xlu0 %118
  %v121 = vadd.f32 %v111, %v119
  %v122 = vtanh.pop %v121
  %124 = vrot.lane.b32.xlu0 %v122, 64
  %v125 = vpop.permute.xlu0 %124
  %v127 = vmul.f32 %v105, %v125
  %129 = vrot.lane.b32.xlu0 %v127, 32
  %v130 = vpop.permute.xlu0 %129
  %vm132 = vcmask 254976
  %133 = vst.msk [vmem:[%s2] sm:$0x3] %vm132, %v130
  %s134 = scalar_lea.vmem %s0, 2
  %v135 = vld [vmem:[%s134] sm:$0x3]
  %v136 = vsel %vm25, %v130, 0
  %138 = vmatprep.subr.mxu0 0.0
  %139 = vmatpush1.msra.mxu0 %v18
  %140 = vmatprep.subr.mxu0 0.0
  %141 = vmatpush1.msra.mxu0 %v19
  %142 = vmatprep.subr.mxu0 0.0
  %143 = vmatpush1.msra.mxu0 %v20
  %144 = vmatprep.subr.mxu0 0.0
  %145 = vmatpush1.msra.mxu0 %v21
  %146 = vmatprep.subr.mxu0 0.0
  %147 = vmatpush1.msra.mxu0 0.0
  %148 = vmatprep.subr.mxu0 0.0
  %149 = vmatpush1.msra.mxu0 0.0
  %150 = vmatprep.subr.mxu0 0.0
  %151 = vmatpush1.msra.mxu0 0.0
  %152 = vmatprep.subr.mxu0 0.0
  %153 = vmatpush1.msra.mxu0 0.0
  %154 = vmatprep.subr.mxu0 0.0
  %155 = vmatpush1.msra.mxu0 0.0
  %156 = vmatprep.subr.mxu0 0.0
  %157 = vmatpush1.msra.mxu0 0.0
  %158 = vmatprep.subr.mxu0 0.0
  %159 = vmatpush1.msra.mxu0 0.0
  %160 = vmatprep.subr.mxu0 0.0
  %161 = vmatpush1.msra.mxu0 0.0
  %162 = vmatprep.subr.mxu0 0.0
  %163 = vmatpush1.msra.mxu0 0.0
  %164 = vmatprep.subr.mxu0 0.0
  %165 = vmatpush1.msra.mxu0 0.0
  %166 = vmatprep.subr.mxu0 0.0
  %167 = vmatpush1.msra.mxu0 0.0
  %168 = vmatprep.subr.mxu0 0.0
  %169 = vmatpush1.msra.mxu0 0.0
  %170 = vmatprep.subr.mxu0 0.0
  %171 = vmatpush1.msra.mxu0 0.0
  %172 = vmatprep.subr.mxu0 0.0
  %173 = vmatpush1.msra.mxu0 0.0
  %174 = vmatprep.subr.mxu0 0.0
  %175 = vmatpush1.msra.mxu0 0.0
  %176 = vmatprep.subr.mxu0 0.0
  %177 = vmatpush1.msra.mxu0 0.0
  %178 = vmatprep.subr.mxu0 0.0
  %179 = vmatpush1.msra.mxu0 0.0
  %180 = vmatprep.subr.mxu0 0.0
  %181 = vmatpush1.msra.mxu0 0.0
  %182 = vmatprep.subr.mxu0 0.0
  %183 = vmatpush1.msra.mxu0 0.0
  %184 = vmatprep.subr.mxu0 0.0
  %185 = vmatpush1.msra.mxu0 0.0
  %186 = vmatprep.subr.mxu0 0.0
  %187 = vmatpush1.msra.mxu0 0.0
  %188 = vmatprep.subr.mxu0 0.0
  %189 = vmatpush1.msra.mxu0 0.0
  %190 = vmatprep.subr.mxu0 0.0
  %191 = vmatpush1.msra.mxu0 0.0
  %192 = vmatprep.subr.mxu0 0.0
  %193 = vmatpush1.msra.mxu0 0.0
  %194 = vmatprep.subr.mxu0 0.0
  %195 = vmatpush1.msra.mxu0 0.0
  %196 = vmatprep.subr.mxu0 0.0
  %197 = vmatpush1.msra.mxu0 0.0
  %198 = vmatprep.subr.mxu0 0.0
  %199 = vmatpush1.msra.mxu0 0.0
  %200 = vmatprep.subr.mxu0 0.0
  %201 = vmatpush1.msra.mxu0 0.0
  %202 = vmatprep.mubr.f32.mxu0 0.0
  %203 = vmatmul.mubr.f32.gmra.mrb[0].mxu0 %v136
  %v204 = vpop.f32.mrb[0].mxu0
  %v205 = vadd.f32 0.0, %v204
  %v206 = vpop.f32.mrb[0].mxu0
  %207 = vdwg.mxu0
  %v208 = vadd.f32 %v135, %v205
  %v209 = vxor.u32 %v208, 2147483648
  %v210 = vmul.f32 %v209, 1.442695
  %v211 = vpow.pop %v210
  %v212 = vadd.f32 %v211, 1.0
  %v213 = vrcp.pop %v212
  %v214 = vmul.f32 1.0, %v213
  %v215 = vtanh.pop %v208
  %v216 = vmul.f32 %v214, %v121
  %218 = vrot.lane.b32.xlu0 %v215, 64
  %v219 = vpop.permute.xlu0 %218
  %v221 = vmul.f32 %v214, %v219
  %223 = vrot.lane.b32.xlu0 %v221, 32
  %v224 = vpop.permute.xlu0 %223
  %v226 = vadd.f32 %v216, %v224
  %v227 = vtanh.pop %v226
  %229 = vrot.lane.b32.xlu0 %v227, 64
  %v230 = vpop.permute.xlu0 %229
  %v232 = vmul.f32 %v214, %v230
  %234 = vrot.lane.b32.xlu0 %v232, 32
  %v235 = vpop.permute.xlu0 %234
  %s237 = scalar_lea.vmem %s2, 2
  %238 = vst.msk [vmem:[%s237] sm:$0x3] %vm132, %v235
  %s239 = scalar_lea.vmem %s0, 4
  %v240 = vld [vmem:[%s239] sm:$0x3]
  %v241 = vsel %vm25, %v235, 0
  %243 = vmatprep.subr.mxu0 0.0
  %244 = vmatpush1.msra.mxu0 %v18
  %245 = vmatprep.subr.mxu0 0.0
  %246 = vmatpush1.msra.mxu0 %v19
  %247 = vmatprep.subr.mxu0 0.0
  %248 = vmatpush1.msra.mxu0 %v20
  %249 = vmatprep.subr.mxu0 0.0
  %250 = vmatpush1.msra.mxu0 %v21
  %251 = vmatprep.subr.mxu0 0.0
  %252 = vmatpush1.msra.mxu0 0.0
  %253 = vmatprep.subr.mxu0 0.0
  %254 = vmatpush1.msra.mxu0 0.0
  %255 = vmatprep.subr.mxu0 0.0
  %256 = vmatpush1.msra.mxu0 0.0
  %257 = vmatprep.subr.mxu0 0.0
  %258 = vmatpush1.msra.mxu0 0.0
  %259 = vmatprep.subr.mxu0 0.0
  %260 = vmatpush1.msra.mxu0 0.0
  %261 = vmatprep.subr.mxu0 0.0
  %262 = vmatpush1.msra.mxu0 0.0
  %263 = vmatprep.subr.mxu0 0.0
  %264 = vmatpush1.msra.mxu0 0.0
  %265 = vmatprep.subr.mxu0 0.0
  %266 = vmatpush1.msra.mxu0 0.0
  %267 = vmatprep.subr.mxu0 0.0
  %268 = vmatpush1.msra.mxu0 0.0
  %269 = vmatprep.subr.mxu0 0.0
  %270 = vmatpush1.msra.mxu0 0.0
  %271 = vmatprep.subr.mxu0 0.0
  %272 = vmatpush1.msra.mxu0 0.0
  %273 = vmatprep.subr.mxu0 0.0
  %274 = vmatpush1.msra.mxu0 0.0
  %275 = vmatprep.subr.mxu0 0.0
  %276 = vmatpush1.msra.mxu0 0.0
  %277 = vmatprep.subr.mxu0 0.0
  %278 = vmatpush1.msra.mxu0 0.0
  %279 = vmatprep.subr.mxu0 0.0
  %280 = vmatpush1.msra.mxu0 0.0
  %281 = vmatprep.subr.mxu0 0.0
  %282 = vmatpush1.msra.mxu0 0.0
  %283 = vmatprep.subr.mxu0 0.0
  %284 = vmatpush1.msra.mxu0 0.0
  %285 = vmatprep.subr.mxu0 0.0
  %286 = vmatpush1.msra.mxu0 0.0
  %287 = vmatprep.subr.mxu0 0.0
  %288 = vmatpush1.msra.mxu0 0.0
  %289 = vmatprep.subr.mxu0 0.0
  %290 = vmatpush1.msra.mxu0 0.0
  %291 = vmatprep.subr.mxu0 0.0
  %292 = vmatpush1.msra.mxu0 0.0
  %293 = vmatprep.subr.mxu0 0.0
  %294 = vmatpush1.msra.mxu0 0.0
  %295 = vmatprep.subr.mxu0 0.0
  %296 = vmatpush1.msra.mxu0 0.0
  %297 = vmatprep.subr.mxu0 0.0
  %298 = vmatpush1.msra.mxu0 0.0
  %299 = vmatprep.subr.mxu0 0.0
  %300 = vmatpush1.msra.mxu0 0.0
  %301 = vmatprep.subr.mxu0 0.0
  %302 = vmatpush1.msra.mxu0 0.0
  %303 = vmatprep.subr.mxu0 0.0
  %304 = vmatpush1.msra.mxu0 0.0
  %305 = vmatprep.subr.mxu0 0.0
  %306 = vmatpush1.msra.mxu0 0.0
  %307 = vmatprep.mubr.f32.mxu0 0.0
  %308 = vmatmul.mubr.f32.gmra.mrb[0].mxu0 %v241
  %v309 = vpop.f32.mrb[0].mxu0
  %v310 = vadd.f32 0.0, %v309
  %v311 = vpop.f32.mrb[0].mxu0
  %312 = vdwg.mxu0
  %v313 = vadd.f32 %v240, %v310
  %v314 = vxor.u32 %v313, 2147483648
  %v315 = vmul.f32 %v314, 1.442695
  %v316 = vpow.pop %v315
  %v317 = vadd.f32 %v316, 1.0
  %v318 = vrcp.pop %v317
  %v319 = vmul.f32 1.0, %v318
  %v320 = vtanh.pop %v313
  %v321 = vmul.f32 %v319, %v226
  %323 = vrot.lane.b32.xlu0 %v320, 64
  %v324 = vpop.permute.xlu0 %323
  %v326 = vmul.f32 %v319, %v324
  %328 = vrot.lane.b32.xlu0 %v326, 32
  %v329 = vpop.permute.xlu0 %328
  %v331 = vadd.f32 %v321, %v329
  %v332 = vtanh.pop %v331
  %334 = vrot.lane.b32.xlu0 %v332, 64
  %v335 = vpop.permute.xlu0 %334
  %v337 = vmul.f32 %v319, %v335
  %339 = vrot.lane.b32.xlu0 %v337, 32
  %v340 = vpop.permute.xlu0 %339
  %s342 = scalar_lea.vmem %s2, 4
  %343 = vst.msk [vmem:[%s342] sm:$0x3] %vm132, %v340
  %s344 = scalar_lea.vmem %s0, 6
  %v345 = vld [vmem:[%s344] sm:$0x3]
  %v346 = vsel %vm25, %v340, 0
  %348 = vmatprep.subr.mxu0 0.0
  %349 = vmatpush1.msra.mxu0 %v18
  %350 = vmatprep.subr.mxu0 0.0
  %351 = vmatpush1.msra.mxu0 %v19
  %352 = vmatprep.subr.mxu0 0.0
  %353 = vmatpush1.msra.mxu0 %v20
  %354 = vmatprep.subr.mxu0 0.0
  %355 = vmatpush1.msra.mxu0 %v21
  %356 = vmatprep.subr.mxu0 0.0
  %357 = vmatpush1.msra.mxu0 0.0
  %358 = vmatprep.subr.mxu0 0.0
  %359 = vmatpush1.msra.mxu0 0.0
  %360 = vmatprep.subr.mxu0 0.0
  %361 = vmatpush1.msra.mxu0 0.0
  %362 = vmatprep.subr.mxu0 0.0
  %363 = vmatpush1.msra.mxu0 0.0
  %364 = vmatprep.subr.mxu0 0.0
  %365 = vmatpush1.msra.mxu0 0.0
  %366 = vmatprep.subr.mxu0 0.0
  %367 = vmatpush1.msra.mxu0 0.0
  %368 = vmatprep.subr.mxu0 0.0
  %369 = vmatpush1.msra.mxu0 0.0
  %370 = vmatprep.subr.mxu0 0.0
  %371 = vmatpush1.msra.mxu0 0.0
  %372 = vmatprep.subr.mxu0 0.0
  %373 = vmatpush1.msra.mxu0 0.0
  %374 = vmatprep.subr.mxu0 0.0
  %375 = vmatpush1.msra.mxu0 0.0
  %376 = vmatprep.subr.mxu0 0.0
  %377 = vmatpush1.msra.mxu0 0.0
  %378 = vmatprep.subr.mxu0 0.0
  %379 = vmatpush1.msra.mxu0 0.0
  %380 = vmatprep.subr.mxu0 0.0
  %381 = vmatpush1.msra.mxu0 0.0
  %382 = vmatprep.subr.mxu0 0.0
  %383 = vmatpush1.msra.mxu0 0.0
  %384 = vmatprep.subr.mxu0 0.0
  %385 = vmatpush1.msra.mxu0 0.0
  %386 = vmatprep.subr.mxu0 0.0
  %387 = vmatpush1.msra.mxu0 0.0
  %388 = vmatprep.subr.mxu0 0.0
  %389 = vmatpush1.msra.mxu0 0.0
  %390 = vmatprep.subr.mxu0 0.0
  %391 = vmatpush1.msra.mxu0 0.0
  %392 = vmatprep.subr.mxu0 0.0
  %393 = vmatpush1.msra.mxu0 0.0
  %394 = vmatprep.subr.mxu0 0.0
  %395 = vmatpush1.msra.mxu0 0.0
  %396 = vmatprep.subr.mxu0 0.0
  %397 = vmatpush1.msra.mxu0 0.0
  %398 = vmatprep.subr.mxu0 0.0
  %399 = vmatpush1.msra.mxu0 0.0
  %400 = vmatprep.subr.mxu0 0.0
  %401 = vmatpush1.msra.mxu0 0.0
  %402 = vmatprep.subr.mxu0 0.0
  %403 = vmatpush1.msra.mxu0 0.0
  %404 = vmatprep.subr.mxu0 0.0
  %405 = vmatpush1.msra.mxu0 0.0
  %406 = vmatprep.subr.mxu0 0.0
  %407 = vmatpush1.msra.mxu0 0.0
  %408 = vmatprep.subr.mxu0 0.0
  %409 = vmatpush1.msra.mxu0 0.0
  %410 = vmatprep.subr.mxu0 0.0
  %411 = vmatpush1.msra.mxu0 0.0
  %412 = vmatprep.mubr.f32.mxu0 0.0
  %413 = vmatmul.mubr.f32.gmra.mrb[0].mxu0 %v346
  %v414 = vpop.f32.mrb[0].mxu0
  %v415 = vadd.f32 0.0, %v414
  %v416 = vpop.f32.mrb[0].mxu0
  %417 = vdwg.mxu0
  %v418 = vadd.f32 %v345, %v415
  %v419 = vxor.u32 %v418, 2147483648
  %v420 = vmul.f32 %v419, 1.442695
  %v421 = vpow.pop %v420
  %v422 = vadd.f32 %v421, 1.0
  %v423 = vrcp.pop %v422
  %v424 = vmul.f32 1.0, %v423
  %v425 = vtanh.pop %v418
  %v426 = vmul.f32 %v424, %v331
  %428 = vrot.lane.b32.xlu0 %v425, 64
  %v429 = vpop.permute.xlu0 %428
  %v431 = vmul.f32 %v424, %v429
  %433 = vrot.lane.b32.xlu0 %v431, 32
  %v434 = vpop.permute.xlu0 %433
  %v436 = vadd.f32 %v426, %v434
  %v437 = vtanh.pop %v436
  %439 = vrot.lane.b32.xlu0 %v437, 64
  %v440 = vpop.permute.xlu0 %439
  %v442 = vmul.f32 %v424, %v440
  %444 = vrot.lane.b32.xlu0 %v442, 32
  %v445 = vpop.permute.xlu0 %444
  %s447 = scalar_lea.vmem %s2, 6
  %448 = vst.msk [vmem:[%s447] sm:$0x3] %vm132, %v445
  %s449 = scalar_lea.vmem %s0, 8
  %v450 = vld [vmem:[%s449] sm:$0x3]
  %v451 = vsel %vm25, %v445, 0
  %453 = vmatprep.subr.mxu0 0.0
  %454 = vmatpush1.msra.mxu0 %v18
  %455 = vmatprep.subr.mxu0 0.0
  %456 = vmatpush1.msra.mxu0 %v19
  %457 = vmatprep.subr.mxu0 0.0
  %458 = vmatpush1.msra.mxu0 %v20
  %459 = vmatprep.subr.mxu0 0.0
  %460 = vmatpush1.msra.mxu0 %v21
  %461 = vmatprep.subr.mxu0 0.0
  %462 = vmatpush1.msra.mxu0 0.0
  %463 = vmatprep.subr.mxu0 0.0
  %464 = vmatpush1.msra.mxu0 0.0
  %465 = vmatprep.subr.mxu0 0.0
  %466 = vmatpush1.msra.mxu0 0.0
  %467 = vmatprep.subr.mxu0 0.0
  %468 = vmatpush1.msra.mxu0 0.0
  %469 = vmatprep.subr.mxu0 0.0
  %470 = vmatpush1.msra.mxu0 0.0
  %471 = vmatprep.subr.mxu0 0.0
  %472 = vmatpush1.msra.mxu0 0.0
  %473 = vmatprep.subr.mxu0 0.0
  %474 = vmatpush1.msra.mxu0 0.0
  %475 = vmatprep.subr.mxu0 0.0
  %476 = vmatpush1.msra.mxu0 0.0
  %477 = vmatprep.subr.mxu0 0.0
  %478 = vmatpush1.msra.mxu0 0.0
  %479 = vmatprep.subr.mxu0 0.0
  %480 = vmatpush1.msra.mxu0 0.0
  %481 = vmatprep.subr.mxu0 0.0
  %482 = vmatpush1.msra.mxu0 0.0
  %483 = vmatprep.subr.mxu0 0.0
  %484 = vmatpush1.msra.mxu0 0.0
  %485 = vmatprep.subr.mxu0 0.0
  %486 = vmatpush1.msra.mxu0 0.0
  %487 = vmatprep.subr.mxu0 0.0
  %488 = vmatpush1.msra.mxu0 0.0
  %489 = vmatprep.subr.mxu0 0.0
  %490 = vmatpush1.msra.mxu0 0.0
  %491 = vmatprep.subr.mxu0 0.0
  %492 = vmatpush1.msra.mxu0 0.0
  %493 = vmatprep.subr.mxu0 0.0
  %494 = vmatpush1.msra.mxu0 0.0
  %495 = vmatprep.subr.mxu0 0.0
  %496 = vmatpush1.msra.mxu0 0.0
  %497 = vmatprep.subr.mxu0 0.0
  %498 = vmatpush1.msra.mxu0 0.0
  %499 = vmatprep.subr.mxu0 0.0
  %500 = vmatpush1.msra.mxu0 0.0
  %501 = vmatprep.subr.mxu0 0.0
  %502 = vmatpush1.msra.mxu0 0.0
  %503 = vmatprep.subr.mxu0 0.0
  %504 = vmatpush1.msra.mxu0 0.0
  %505 = vmatprep.subr.mxu0 0.0
  %506 = vmatpush1.msra.mxu0 0.0
  %507 = vmatprep.subr.mxu0 0.0
  %508 = vmatpush1.msra.mxu0 0.0
  %509 = vmatprep.subr.mxu0 0.0
  %510 = vmatpush1.msra.mxu0 0.0
  %511 = vmatprep.subr.mxu0 0.0
  %512 = vmatpush1.msra.mxu0 0.0
  %513 = vmatprep.subr.mxu0 0.0
  %514 = vmatpush1.msra.mxu0 0.0
  %515 = vmatprep.subr.mxu0 0.0
  %516 = vmatpush1.msra.mxu0 0.0
  %517 = vmatprep.mubr.f32.mxu0 0.0
  %518 = vmatmul.mubr.f32.gmra.mrb[0].mxu0 %v451
  %v519 = vpop.f32.mrb[0].mxu0
  %v520 = vadd.f32 0.0, %v519
  %v521 = vpop.f32.mrb[0].mxu0
  %522 = vdwg.mxu0
  %v523 = vadd.f32 %v450, %v520
  %v524 = vxor.u32 %v523, 2147483648
  %v525 = vmul.f32 %v524, 1.442695
  %v526 = vpow.pop %v525
  %v527 = vadd.f32 %v526, 1.0
  %v528 = vrcp.pop %v527
  %v529 = vmul.f32 1.0, %v528
  %v530 = vtanh.pop %v523
  %v531 = vmul.f32 %v529, %v436
  %533 = vrot.lane.b32.xlu0 %v530, 64
  %v534 = vpop.permute.xlu0 %533
  %v536 = vmul.f32 %v529, %v534
  %538 = vrot.lane.b32.xlu0 %v536, 32
  %v539 = vpop.permute.xlu0 %538
  %v541 = vadd.f32 %v531, %v539
  %v542 = vtanh.pop %v541
  %544 = vrot.lane.b32.xlu0 %v542, 64
  %v545 = vpop.permute.xlu0 %544
  %v547 = vmul.f32 %v529, %v545
  %549 = vrot.lane.b32.xlu0 %v547, 32
  %v550 = vpop.permute.xlu0 %549
  %s552 = scalar_lea.vmem %s2, 8
  %553 = vst.msk [vmem:[%s552] sm:$0x3] %vm132, %v550
  %s554 = scalar_lea.vmem %s0, 10
  %v555 = vld [vmem:[%s554] sm:$0x3]
  %v556 = vsel %vm25, %v550, 0
  %558 = vmatprep.subr.mxu0 0.0
  %559 = vmatpush1.msra.mxu0 %v18
  %560 = vmatprep.subr.mxu0 0.0
  %561 = vmatpush1.msra.mxu0 %v19
  %562 = vmatprep.subr.mxu0 0.0
  %563 = vmatpush1.msra.mxu0 %v20
  %564 = vmatprep.subr.mxu0 0.0
  %565 = vmatpush1.msra.mxu0 %v21
  %566 = vmatprep.subr.mxu0 0.0
  %567 = vmatpush1.msra.mxu0 0.0
  %568 = vmatprep.subr.mxu0 0.0
  %569 = vmatpush1.msra.mxu0 0.0
  %570 = vmatprep.subr.mxu0 0.0
  %571 = vmatpush1.msra.mxu0 0.0
  %572 = vmatprep.subr.mxu0 0.0
  %573 = vmatpush1.msra.mxu0 0.0
  %574 = vmatprep.subr.mxu0 0.0
  %575 = vmatpush1.msra.mxu0 0.0
  %576 = vmatprep.subr.mxu0 0.0
  %577 = vmatpush1.msra.mxu0 0.0
  %578 = vmatprep.subr.mxu0 0.0
  %579 = vmatpush1.msra.mxu0 0.0
  %580 = vmatprep.subr.mxu0 0.0
  %581 = vmatpush1.msra.mxu0 0.0
  %582 = vmatprep.subr.mxu0 0.0
  %583 = vmatpush1.msra.mxu0 0.0
  %584 = vmatprep.subr.mxu0 0.0
  %585 = vmatpush1.msra.mxu0 0.0
  %586 = vmatprep.subr.mxu0 0.0
  %587 = vmatpush1.msra.mxu0 0.0
  %588 = vmatprep.subr.mxu0 0.0
  %589 = vmatpush1.msra.mxu0 0.0
  %590 = vmatprep.subr.mxu0 0.0
  %591 = vmatpush1.msra.mxu0 0.0
  %592 = vmatprep.subr.mxu0 0.0
  %593 = vmatpush1.msra.mxu0 0.0
  %594 = vmatprep.subr.mxu0 0.0
  %595 = vmatpush1.msra.mxu0 0.0
  %596 = vmatprep.subr.mxu0 0.0
  %597 = vmatpush1.msra.mxu0 0.0
  %598 = vmatprep.subr.mxu0 0.0
  %599 = vmatpush1.msra.mxu0 0.0
  %600 = vmatprep.subr.mxu0 0.0
  %601 = vmatpush1.msra.mxu0 0.0
  %602 = vmatprep.subr.mxu0 0.0
  %603 = vmatpush1.msra.mxu0 0.0
  %604 = vmatprep.subr.mxu0 0.0
  %605 = vmatpush1.msra.mxu0 0.0
  %606 = vmatprep.subr.mxu0 0.0
  %607 = vmatpush1.msra.mxu0 0.0
  %608 = vmatprep.subr.mxu0 0.0
  %609 = vmatpush1.msra.mxu0 0.0
  %610 = vmatprep.subr.mxu0 0.0
  %611 = vmatpush1.msra.mxu0 0.0
  %612 = vmatprep.subr.mxu0 0.0
  %613 = vmatpush1.msra.mxu0 0.0
  %614 = vmatprep.subr.mxu0 0.0
  %615 = vmatpush1.msra.mxu0 0.0
  %616 = vmatprep.subr.mxu0 0.0
  %617 = vmatpush1.msra.mxu0 0.0
  %618 = vmatprep.subr.mxu0 0.0
  %619 = vmatpush1.msra.mxu0 0.0
  %620 = vmatprep.subr.mxu0 0.0
  %621 = vmatpush1.msra.mxu0 0.0
  %622 = vmatprep.mubr.f32.mxu0 0.0
  %623 = vmatmul.mubr.f32.gmra.mrb[0].mxu0 %v556
  %v624 = vpop.f32.mrb[0].mxu0
  %v625 = vadd.f32 0.0, %v624
  %v626 = vpop.f32.mrb[0].mxu0
  %627 = vdwg.mxu0
  %v628 = vadd.f32 %v555, %v625
  %v629 = vxor.u32 %v628, 2147483648
  %v630 = vmul.f32 %v629, 1.442695
  %v631 = vpow.pop %v630
  %v632 = vadd.f32 %v631, 1.0
  %v633 = vrcp.pop %v632
  %v634 = vmul.f32 1.0, %v633
  %v635 = vtanh.pop %v628
  %v636 = vmul.f32 %v634, %v541
  %638 = vrot.lane.b32.xlu0 %v635, 64
  %v639 = vpop.permute.xlu0 %638
  %v641 = vmul.f32 %v634, %v639
  %643 = vrot.lane.b32.xlu0 %v641, 32
  %v644 = vpop.permute.xlu0 %643
  %v646 = vadd.f32 %v636, %v644
  %v647 = vtanh.pop %v646
  %649 = vrot.lane.b32.xlu0 %v647, 64
  %v650 = vpop.permute.xlu0 %649
  %v652 = vmul.f32 %v634, %v650
  %654 = vrot.lane.b32.xlu0 %v652, 32
  %v655 = vpop.permute.xlu0 %654
  %s657 = scalar_lea.vmem %s2, 10
  %658 = vst.msk [vmem:[%s657] sm:$0x3] %vm132, %v655
  %s659 = scalar_lea.vmem %s0, 12
  %v660 = vld [vmem:[%s659] sm:$0x3]
  %v661 = vsel %vm25, %v655, 0
  %663 = vmatprep.subr.mxu0 0.0
  %664 = vmatpush1.msra.mxu0 %v18
  %665 = vmatprep.subr.mxu0 0.0
  %666 = vmatpush1.msra.mxu0 %v19
  %667 = vmatprep.subr.mxu0 0.0
  %668 = vmatpush1.msra.mxu0 %v20
  %669 = vmatprep.subr.mxu0 0.0
  %670 = vmatpush1.msra.mxu0 %v21
  %671 = vmatprep.subr.mxu0 0.0
  %672 = vmatpush1.msra.mxu0 0.0
  %673 = vmatprep.subr.mxu0 0.0
  %674 = vmatpush1.msra.mxu0 0.0
  %675 = vmatprep.subr.mxu0 0.0
  %676 = vmatpush1.msra.mxu0 0.0
  %677 = vmatprep.subr.mxu0 0.0
  %678 = vmatpush1.msra.mxu0 0.0
  %679 = vmatprep.subr.mxu0 0.0
  %680 = vmatpush1.msra.mxu0 0.0
  %681 = vmatprep.subr.mxu0 0.0
  %682 = vmatpush1.msra.mxu0 0.0
  %683 = vmatprep.subr.mxu0 0.0
  %684 = vmatpush1.msra.mxu0 0.0
  %685 = vmatprep.subr.mxu0 0.0
  %686 = vmatpush1.msra.mxu0 0.0
  %687 = vmatprep.subr.mxu0 0.0
  %688 = vmatpush1.msra.mxu0 0.0
  %689 = vmatprep.subr.mxu0 0.0
  %690 = vmatpush1.msra.mxu0 0.0
  %691 = vmatprep.subr.mxu0 0.0
  %692 = vmatpush1.msra.mxu0 0.0
  %693 = vmatprep.subr.mxu0 0.0
  %694 = vmatpush1.msra.mxu0 0.0
  %695 = vmatprep.subr.mxu0 0.0
  %696 = vmatpush1.msra.mxu0 0.0
  %697 = vmatprep.subr.mxu0 0.0
  %698 = vmatpush1.msra.mxu0 0.0
  %699 = vmatprep.subr.mxu0 0.0
  %700 = vmatpush1.msra.mxu0 0.0
  %701 = vmatprep.subr.mxu0 0.0
  %702 = vmatpush1.msra.mxu0 0.0
  %703 = vmatprep.subr.mxu0 0.0
  %704 = vmatpush1.msra.mxu0 0.0
  %705 = vmatprep.subr.mxu0 0.0
  %706 = vmatpush1.msra.mxu0 0.0
  %707 = vmatprep.subr.mxu0 0.0
  %708 = vmatpush1.msra.mxu0 0.0
  %709 = vmatprep.subr.mxu0 0.0
  %710 = vmatpush1.msra.mxu0 0.0
  %711 = vmatprep.subr.mxu0 0.0
  %712 = vmatpush1.msra.mxu0 0.0
  %713 = vmatprep.subr.mxu0 0.0
  %714 = vmatpush1.msra.mxu0 0.0
  %715 = vmatprep.subr.mxu0 0.0
  %716 = vmatpush1.msra.mxu0 0.0
  %717 = vmatprep.subr.mxu0 0.0
  %718 = vmatpush1.msra.mxu0 0.0
  %719 = vmatprep.subr.mxu0 0.0
  %720 = vmatpush1.msra.mxu0 0.0
  %721 = vmatprep.subr.mxu0 0.0
  %722 = vmatpush1.msra.mxu0 0.0
  %723 = vmatprep.subr.mxu0 0.0
  %724 = vmatpush1.msra.mxu0 0.0
  %725 = vmatprep.subr.mxu0 0.0
  %726 = vmatpush1.msra.mxu0 0.0
  %727 = vmatprep.mubr.f32.mxu0 0.0
  %728 = vmatmul.mubr.f32.gmra.mrb[0].mxu0 %v661
  %v729 = vpop.f32.mrb[0].mxu0
  %v730 = vadd.f32 0.0, %v729
  %v731 = vpop.f32.mrb[0].mxu0
  %732 = vdwg.mxu0
  %v733 = vadd.f32 %v660, %v730
  %v734 = vxor.u32 %v733, 2147483648
  %v735 = vmul.f32 %v734, 1.442695
  %v736 = vpow.pop %v735
  %v737 = vadd.f32 %v736, 1.0
  %v738 = vrcp.pop %v737
  %v739 = vmul.f32 1.0, %v738
  %v740 = vtanh.pop %v733
  %v741 = vmul.f32 %v739, %v646
  %743 = vrot.lane.b32.xlu0 %v740, 64
  %v744 = vpop.permute.xlu0 %743
  %v746 = vmul.f32 %v739, %v744
  %748 = vrot.lane.b32.xlu0 %v746, 32
  %v749 = vpop.permute.xlu0 %748
  %v751 = vadd.f32 %v741, %v749
  %v752 = vtanh.pop %v751
  %754 = vrot.lane.b32.xlu0 %v752, 64
  %v755 = vpop.permute.xlu0 %754
  %v757 = vmul.f32 %v739, %v755
  %759 = vrot.lane.b32.xlu0 %v757, 32
  %v760 = vpop.permute.xlu0 %759
  %s762 = scalar_lea.vmem %s2, 12
  %763 = vst.msk [vmem:[%s762] sm:$0x3] %vm132, %v760
  %s764 = scalar_lea.vmem %s0, 14
  %v765 = vld [vmem:[%s764] sm:$0x3]
  %v766 = vsel %vm25, %v760, 0
  %768 = vmatprep.subr.mxu0 0.0
  %769 = vmatpush1.msra.mxu0 %v18
  %770 = vmatprep.subr.mxu0 0.0
  %771 = vmatpush1.msra.mxu0 %v19
  %772 = vmatprep.subr.mxu0 0.0
  %773 = vmatpush1.msra.mxu0 %v20
  %774 = vmatprep.subr.mxu0 0.0
  %775 = vmatpush1.msra.mxu0 %v21
  %776 = vmatprep.subr.mxu0 0.0
  %777 = vmatpush1.msra.mxu0 0.0
  %778 = vmatprep.subr.mxu0 0.0
  %779 = vmatpush1.msra.mxu0 0.0
  %780 = vmatprep.subr.mxu0 0.0
  %781 = vmatpush1.msra.mxu0 0.0
  %782 = vmatprep.subr.mxu0 0.0
  %783 = vmatpush1.msra.mxu0 0.0
  %784 = vmatprep.subr.mxu0 0.0
  %785 = vmatpush1.msra.mxu0 0.0
  %786 = vmatprep.subr.mxu0 0.0
  %787 = vmatpush1.msra.mxu0 0.0
  %788 = vmatprep.subr.mxu0 0.0
  %789 = vmatpush1.msra.mxu0 0.0
  %790 = vmatprep.subr.mxu0 0.0
  %791 = vmatpush1.msra.mxu0 0.0
  %792 = vmatprep.subr.mxu0 0.0
  %793 = vmatpush1.msra.mxu0 0.0
  %794 = vmatprep.subr.mxu0 0.0
  %795 = vmatpush1.msra.mxu0 0.0
  %796 = vmatprep.subr.mxu0 0.0
  %797 = vmatpush1.msra.mxu0 0.0
  %798 = vmatprep.subr.mxu0 0.0
  %799 = vmatpush1.msra.mxu0 0.0
  %800 = vmatprep.subr.mxu0 0.0
  %801 = vmatpush1.msra.mxu0 0.0
  %802 = vmatprep.subr.mxu0 0.0
  %803 = vmatpush1.msra.mxu0 0.0
  %804 = vmatprep.subr.mxu0 0.0
  %805 = vmatpush1.msra.mxu0 0.0
  %806 = vmatprep.subr.mxu0 0.0
  %807 = vmatpush1.msra.mxu0 0.0
  %808 = vmatprep.subr.mxu0 0.0
  %809 = vmatpush1.msra.mxu0 0.0
  %810 = vmatprep.subr.mxu0 0.0
  %811 = vmatpush1.msra.mxu0 0.0
  %812 = vmatprep.subr.mxu0 0.0
  %813 = vmatpush1.msra.mxu0 0.0
  %814 = vmatprep.subr.mxu0 0.0
  %815 = vmatpush1.msra.mxu0 0.0
  %816 = vmatprep.subr.mxu0 0.0
  %817 = vmatpush1.msra.mxu0 0.0
  %818 = vmatprep.subr.mxu0 0.0
  %819 = vmatpush1.msra.mxu0 0.0
  %820 = vmatprep.subr.mxu0 0.0
  %821 = vmatpush1.msra.mxu0 0.0
  %822 = vmatprep.subr.mxu0 0.0
  %823 = vmatpush1.msra.mxu0 0.0
  %824 = vmatprep.subr.mxu0 0.0
  %825 = vmatpush1.msra.mxu0 0.0
  %826 = vmatprep.subr.mxu0 0.0
  %827 = vmatpush1.msra.mxu0 0.0
  %828 = vmatprep.subr.mxu0 0.0
  %829 = vmatpush1.msra.mxu0 0.0
  %830 = vmatprep.subr.mxu0 0.0
  %831 = vmatpush1.msra.mxu0 0.0
  %832 = vmatprep.mubr.f32.mxu0 0.0
  %833 = vmatmul.mubr.f32.gmra.mrb[0].mxu0 %v766
  %v834 = vpop.f32.mrb[0].mxu0
  %v835 = vadd.f32 0.0, %v834
  %v836 = vpop.f32.mrb[0].mxu0
  %837 = vdwg.mxu0
  %v838 = vadd.f32 %v765, %v835
  %v839 = vxor.u32 %v838, 2147483648
  %v840 = vmul.f32 %v839, 1.442695
  %v841 = vpow.pop %v840
  %v842 = vadd.f32 %v841, 1.0
  %v843 = vrcp.pop %v842
  %v844 = vmul.f32 1.0, %v843
  %v845 = vtanh.pop %v838
  %v846 = vmul.f32 %v844, %v751
  %848 = vrot.lane.b32.xlu0 %v845, 64
  %v849 = vpop.permute.xlu0 %848
  %v851 = vmul.f32 %v844, %v849
  %853 = vrot.lane.b32.xlu0 %v851, 32
  %v854 = vpop.permute.xlu0 %853
  %v856 = vadd.f32 %v846, %v854
  %v857 = vtanh.pop %v856
  %859 = vrot.lane.b32.xlu0 %v857, 64
  %v860 = vpop.permute.xlu0 %859
  %v862 = vmul.f32 %v844, %v860
  %864 = vrot.lane.b32.xlu0 %v862, 32
  %v865 = vpop.permute.xlu0 %864
  %s867 = scalar_lea.vmem %s2, 14
  %868 = vst.msk [vmem:[%s867] sm:$0x3] %vm132, %v865
  %869 = vst.msk [vmem:[#allocation2] sm:$0x3] %vm132, %v865
  %871 = vrot.lane.b32.xlu0 %v856, 96
  %v872 = vpop.permute.xlu0 %871
  %874 = vst.msk [vmem:[#allocation3] sm:$0x3] %vm132, %v872
  // Predicated region
  $region14: #{rnnlm_forward.4} parent=0 // pred_check
    _
  $region15: #{rnnlm_forward.4} parent=0 // pred_check_branch
    %876 = sbr.rel (0) target = $region17
  $region16: #{rnnlm_forward.4} parent=0 // pred_region
    _
  $region17: #{rnnlm_forward.4} parent=0 // pred_fallthru
    _
  // Predicated region
  $region18: #{rnnlm_forward.4} parent=0 // pred_check
    _
  $region19: #{rnnlm_forward.4} parent=0 // pred_check_branch
    %878 = sbr.rel (0) target = $region21
  $region20: #{rnnlm_forward.4} parent=0 // pred_region
    _
  $region21: #{rnnlm_forward.4} parent=0 // pred_fallthru
    _

</llo_original>
